<compile_context>
chip_gen: v7x
topology: tpu7x:2x2x1
jax: 0.10.0
libtpu: 0.0.40
codegen_flags: <defaults>
</compile_context>

<pallas_src>
import numpy as np
import jax
import jax.numpy as jnp
from jax.experimental import pallas as pl
from jax.experimental.pallas import tpu as pltpu


# Fixed grouping table from the PyTorch module (n_groups=6, 4 nodes/group).
GROUPING = np.array([[0, 3, 6, 9],
                     [1, 4, 7, 10],
                     [2, 5, 8, 11],
                     [12, 13, 14, 15],
                     [16, 18, 20, 22],
                     [17, 19, 21, 23]], dtype=np.int32)


def _round_up(a, b):
    return ((a + b - 1) // b) * b


def _block_diag(w):
    """(K, a, b) per-node weights -> (K*a, K*b) block-diagonal matrix."""
    K, a, b = w.shape
    eye = jnp.eye(K, dtype=w.dtype)
    return jnp.einsum('kab,kl->kalb', w, eye).reshape(K * a, K * b)


def prepare_params(W1, B1, W2, B2, grouping, output_ch):
    """One-time parameter packing (amortized; NOT part of the forward pass).

    W1: (G, P, Cin, W)   B1: (G, 1, P, W)
    W2: (G, P, W, Cout)  B2: (G, 1, P, Cout)
    Returns block-diagonal weights / flat biases in ORIGINAL node order plus
    the 0/1 group-membership matrix used for the validity mask.
    """
    G, P = grouping.shape
    K = G * P
    perm = grouping.reshape(-1)          # node id sitting at group-order slot j
    inv = np.argsort(perm)               # group-order slot of node id i

    Cin, Wd = W1.shape[2], W1.shape[3]
    Cout = W2.shape[3]

    w1_node = W1.reshape(K, Cin, Wd)[inv]        # (K, Cin, W)   node order
    b1_node = B1.reshape(K, Wd)[inv]             # (K, W)
    w2_node = W2.reshape(K, Wd, Cout)[inv]       # (K, W, Cout)
    b2_node = B2.reshape(K, Cout)[inv]           # (K, Cout)

    # Group membership: gm[i, j*Cout + c] = 1 iff nodes i and j share a group.
    gid = np.zeros((K,), dtype=np.int32)
    for g in range(G):
        gid[grouping[g]] = g
    gm_nodes = (gid[:, None] == gid[None, :]).astype(np.float32)     # (K, K)
    gm = np.repeat(gm_nodes, Cout, axis=1)                           # (K, K*Cout)

    return dict(
        w1_bd=_block_diag(w1_node),              # (K*Cin, K*W)
        b1=b1_node.reshape(1, K * Wd),           # (1, K*W)
        w2_bd=_block_diag(w2_node),              # (K*W, K*Cout)
        b2=b2_node.reshape(1, K * Cout),         # (1, K*Cout)
        gm=jnp.asarray(gm),                      # (K, K*Cout)
    )


def _grouped_pnmlp_kernel(x_ref, valid_ref, gm_ref, w1_ref, b1_ref,
                          w2_ref, b2_ref, o_ref):
    # x_ref:     (bn, K*Cin)   flattened per-node features (node-major columns)
    # valid_ref: (bn, K)
    # gm_ref:    (K, K*Cout)   0/1 group-membership matrix
    # w1_ref:    (K*Cin, K*W)  block-diagonal layer-1 weights (node order)
    # b1_ref:    (1, K*W)
    # w2_ref:    (K*W, K*Cout) block-diagonal layer-2 weights (node order)
    # b2_ref:    (1, K*Cout)
    # o_ref:     (bn, K*Cout)
    x = jnp.maximum(x_ref[...], 0.0)                               # input ReLU
    h = jnp.dot(x, w1_ref[...], preferred_element_type=jnp.float32)
    h = jnp.maximum(h + b1_ref[...], 0.0)                          # layer-1 ReLU
    out = jnp.dot(h, w2_ref[...], preferred_element_type=jnp.float32)
    out = out + b2_ref[...]
    # Per-(node, channel) group-validity mask, fused into the epilogue.
    gv = jnp.dot(valid_ref[...], gm_ref[...],
                 preferred_element_type=jnp.float32)               # (bn, K*Cout)
    o_ref[...] = jnp.where(gv > 0.0, out, 0.0).astype(o_ref.dtype)


def grouped_pnmlp_pallas(h, valid, packed, *, batch_tile=128):
    """h: (N, n_nodes, Cin); valid: (N, n_nodes); packed: see prepare_params."""
    N, K, Cin = h.shape
    KC_in = K * Cin
    KW = packed['w1_bd'].shape[1]
    KC_out = packed['w2_bd'].shape[1]
    Cout = KC_out // K
    assert packed['w1_bd'].shape[0] == KC_in

    # Wrapper glue is only free contiguous reshapes (+ zero-padding of the
    # batch if it is not sublane-aligned); no transposes, no gathers.
    x2d = h.reshape(N, KC_in)
    v2d = valid.astype(jnp.float32)

    bn = int(min(batch_tile, _round_up(N, 8)))       # sublane-aligned batch tile
    N_pad = _round_up(N, bn)
    if N_pad != N:
        x2d = jnp.pad(x2d, ((0, N_pad - N), (0, 0)))
        v2d = jnp.pad(v2d, ((0, N_pad - N), (0, 0)))

    out2d = pl.pallas_call(
        _grouped_pnmlp_kernel,
        out_shape=jax.ShapeDtypeStruct((N_pad, KC_out), h.dtype),
        grid=(N_pad // bn,),
        in_specs=[
            pl.BlockSpec((bn, KC_in), lambda i: (i, 0)),       # x
            pl.BlockSpec((bn, K), lambda i: (i, 0)),           # valid
            pl.BlockSpec((K, KC_out), lambda i: (0, 0)),       # gm
            pl.BlockSpec((KC_in, KW), lambda i: (0, 0)),       # w1 (block-diag)
            pl.BlockSpec((1, KW), lambda i: (0, 0)),           # b1
            pl.BlockSpec((KW, KC_out), lambda i: (0, 0)),      # w2 (block-diag)
            pl.BlockSpec((1, KC_out), lambda i: (0, 0)),       # b2
        ],
        out_specs=pl.BlockSpec((bn, KC_out), lambda i: (i, 0)),
        compiler_params=pltpu.CompilerParams(
            dimension_semantics=("parallel",)),                # shards on v7x 2-TC
    )(x2d, v2d, packed['gm'], packed['w1_bd'], packed['b1'],
      packed['w2_bd'], packed['b2'])

    return out2d[:N].reshape(N, K, Cout)


def reference_grouped_pnmlp(h, valid, W1, B1, W2, B2, grouping):
    """Faithful pure-JAX port of GroupedPNMLP.forward (D=2, input_relu=True)."""
    N, n_nodes, _ = h.shape
    Cout = W2.shape[-1]
    out = jnp.zeros((N, n_nodes, Cout), h.dtype)
    for g in range(grouping.shape[0]):
        idxs = grouping[g]
        group_valid = valid[:, idxs].sum(-1)
        x = jax.nn.relu(h[:, idxs])                                  # input ReLU
        a = jnp.einsum('bkl,klj->bkj', x, W1[g]) + B1[g]
        a = jax.nn.relu(a)
        a = jnp.einsum('bkl,klj->bkj', a, W2[g]) + B2[g]
        a = jnp.where((group_valid > 0)[:, None, None], a, 0.0)
        out = out.at[:, idxs].set(a)
    return out


if __name__ == "__main__":
    # Module defaults: input_ch=32, output_ch=1, W=32, n_nodes=24, D=2, n_groups=6.
    input_ch, output_ch, hidden = 32, 1, 32
    n_groups, n_per = GROUPING.shape
    n_nodes = n_groups * n_per
    N = 8                                     # small batch of samples

    key = jax.random.PRNGKey(0)
    k1, k2, k3, k4, kh, kv = jax.random.split(key, 6)

    bound1 = 1.0 / np.sqrt(input_ch)
    bound2 = 1.0 / np.sqrt(hidden)
    W1 = jax.random.uniform(k1, (n_groups, n_per, input_ch, hidden),
                            jnp.float32, -bound1, bound1)
    B1 = jax.random.uniform(k2, (n_groups, 1, n_per, hidden),
                            jnp.float32, -bound1, bound1)
    W2 = jax.random.uniform(k3, (n_groups, n_per, hidden, output_ch),
                            jnp.float32, -bound2, bound2)
    B2 = jax.random.uniform(k4, (n_groups, 1, n_per, output_ch),
                            jnp.float32, -bound2, bound2)

    h = jax.random.normal(kh, (N, n_nodes, input_ch), jnp.float32)
    valid = (jax.random.uniform(kv, (N, n_nodes)) > 0.3).astype(jnp.float32)
    valid = valid.at[0, GROUPING[0]].set(0.0)   # force one fully-invalid group

    # One-time parameter packing (block-diagonal weights in node order).
    packed = prepare_params(W1, B1, W2, B2, GROUPING, output_ch)

    out = grouped_pnmlp_pallas(h, valid, packed)
    out = jax.block_until_ready(out)

    ref = reference_grouped_pnmlp(h, valid, W1, B1, W2, B2, GROUPING)
    assert out.shape == (N, n_nodes, output_ch)
    assert jnp.allclose(out, ref, atol=1e-4, rtol=1e-4), "mismatch vs reference"

    # TODO(synk): the data-dependent row compaction (torch.where valid_idxs) is
    # replaced by dense compute + zero-masking, which is numerically identical.
    print("KERNEL_OK")
</pallas_src>

<mosaic_0001>
module attributes {stable_mosaic.version = 11 : i64} {
  func.func @_grouped_pnmlp_kernel(%arg0: i32, %arg1: memref<8x768xf32, #tpu.memory_space<vmem>>, %arg2: memref<8x24xf32, #tpu.memory_space<vmem>>, %arg3: memref<24x24xf32, #tpu.memory_space<vmem>>, %arg4: memref<768x768xf32, #tpu.memory_space<vmem>>, %arg5: memref<1x768xf32, #tpu.memory_space<vmem>>, %arg6: memref<768x24xf32, #tpu.memory_space<vmem>>, %arg7: memref<1x24xf32, #tpu.memory_space<vmem>>, %arg8: memref<8x24xf32, #tpu.memory_space<vmem>>) attributes {dimension_semantics = [#tpu.dimension_semantics<parallel>], iteration_bounds = array<i64: 1>, scalar_prefetch = 0 : i64, scratch_operands = 0 : i64, tpu.core_type = #tpu.core_type<tc>, window_params = [{transform_indices = @transform_0, window_bounds = array<i64: 8, 768>}, {transform_indices = @transform_1, window_bounds = array<i64: 8, 24>}, {pipeline_mode = #tpu.pipeline_mode<synchronous>, transform_indices = @transform_2, window_bounds = array<i64: 24, 24>}, {pipeline_mode = #tpu.pipeline_mode<synchronous>, transform_indices = @transform_3, window_bounds = array<i64: 768, 768>}, {pipeline_mode = #tpu.pipeline_mode<synchronous>, transform_indices = @transform_4, window_bounds = array<i64: 1, 768>}, {pipeline_mode = #tpu.pipeline_mode<synchronous>, transform_indices = @transform_5, window_bounds = array<i64: 768, 24>}, {pipeline_mode = #tpu.pipeline_mode<synchronous>, transform_indices = @transform_6, window_bounds = array<i64: 1, 24>}, {transform_indices = @transform_7, window_bounds = array<i64: 8, 24>}]} {
    %c0 = arith.constant 0 : index
    %c0_0 = arith.constant 0 : index
    %0 = vector.load %arg1[%c0, %c0_0] : memref<8x768xf32, #tpu.memory_space<vmem>>, vector<8x768xf32>
    %cst = arith.constant 0.000000e+00 : f32
    %1 = vector.broadcast %cst : f32 to vector<8x768xf32>
    %2 = arith.maximumf %0, %1 : vector<8x768xf32>
    %c0_1 = arith.constant 0 : index
    %c0_2 = arith.constant 0 : index
    %3 = vector.load %arg4[%c0_1, %c0_2] : memref<768x768xf32, #tpu.memory_space<vmem>>, vector<768x768xf32>
    %cst_3 = arith.constant dense<0.000000e+00> : vector<8x768xf32>
    %4 = tpu.matmul %2, %3, %cst_3 {dimension_numbers = #tpu.dot_dimension_numbers<[1], [0], [0], [1], [0, 0, 1, 1], [], []>} : vector<8x768xf32>, vector<768x768xf32>, vector<8x768xf32> -> vector<8x768xf32>
    %c0_4 = arith.constant 0 : index
    %c0_5 = arith.constant 0 : index
    %5 = vector.load %arg5[%c0_4, %c0_5] : memref<1x768xf32, #tpu.memory_space<vmem>>, vector<1x768xf32>
    %6 = vector.broadcast %5 : vector<1x768xf32> to vector<8x768xf32>
    %7 = arith.addf %4, %6 : vector<8x768xf32>
    %cst_6 = arith.constant 0.000000e+00 : f32
    %8 = vector.broadcast %cst_6 : f32 to vector<8x768xf32>
    %9 = arith.maximumf %7, %8 : vector<8x768xf32>
    %c0_7 = arith.constant 0 : index
    %c0_8 = arith.constant 0 : index
    %10 = vector.load %arg6[%c0_7, %c0_8] : memref<768x24xf32, #tpu.memory_space<vmem>>, vector<768x24xf32>
    %cst_9 = arith.constant dense<0.000000e+00> : vector<8x24xf32>
    %11 = tpu.matmul %9, %10, %cst_9 {dimension_numbers = #tpu.dot_dimension_numbers<[1], [0], [0], [1], [0, 0, 1, 1], [], []>} : vector<8x768xf32>, vector<768x24xf32>, vector<8x24xf32> -> vector<8x24xf32>
    %c0_10 = arith.constant 0 : index
    %c0_11 = arith.constant 0 : index
    %12 = vector.load %arg7[%c0_10, %c0_11] : memref<1x24xf32, #tpu.memory_space<vmem>>, vector<1x24xf32>
    %13 = vector.broadcast %12 : vector<1x24xf32> to vector<8x24xf32>
    %14 = arith.addf %11, %13 : vector<8x24xf32>
    %c0_12 = arith.constant 0 : index
    %c0_13 = arith.constant 0 : index
    %15 = vector.load %arg2[%c0_12, %c0_13] : memref<8x24xf32, #tpu.memory_space<vmem>>, vector<8x24xf32>
    %c0_14 = arith.constant 0 : index
    %c0_15 = arith.constant 0 : index
    %16 = vector.load %arg3[%c0_14, %c0_15] : memref<24x24xf32, #tpu.memory_space<vmem>>, vector<24x24xf32>
    %cst_16 = arith.constant dense<0.000000e+00> : vector<8x24xf32>
    %17 = tpu.matmul %15, %16, %cst_16 {dimension_numbers = #tpu.dot_dimension_numbers<[1], [0], [0], [1], [0, 0, 1, 1], [], []>} : vector<8x24xf32>, vector<24x24xf32>, vector<8x24xf32> -> vector<8x24xf32>
    %cst_17 = arith.constant 0.000000e+00 : f32
    %18 = vector.broadcast %cst_17 : f32 to vector<8x24xf32>
    %19 = arith.cmpf ogt, %17, %18 : vector<8x24xf32>
    %cst_18 = arith.constant 0.000000e+00 : f32
    %20 = vector.broadcast %cst_18 : f32 to vector<8x24xf32>
    %21 = arith.select %19, %14, %20 : vector<8x24xi1>, vector<8x24xf32>
    %c0_19 = arith.constant 0 : index
    %c0_20 = arith.constant 0 : index
    %22 = vector.load %arg8[%c0_19, %c0_20] : memref<8x24xf32, #tpu.memory_space<vmem>>, vector<8x24xf32>
    tpu.vector_store %arg8[%c0_19, %c0_20], %21 {strides = array<i32>} : memref<8x24xf32, #tpu.memory_space<vmem>>, vector<8x24xf32>,
    return
  }
  func.func @transform_0(%arg0: i32) -> (i32, i32) {
    %c0_i32 = arith.constant 0 : i32
    %c0_i32_0 = arith.constant 0 : i32
    return %arg0, %c0_i32 : i32, i32
  }
  func.func @transform_1(%arg0: i32) -> (i32, i32) {
    %c0_i32 = arith.constant 0 : i32
    %c0_i32_0 = arith.constant 0 : i32
    return %arg0, %c0_i32 : i32, i32
  }
  func.func @transform_2(%arg0: i32) -> (i32, i32) {
    %c0_i32 = arith.constant 0 : i32
    %c0_i32_0 = arith.constant 0 : i32
    %c0_i32_1 = arith.constant 0 : i32
    return %c0_i32, %c0_i32_0 : i32, i32
  }
  func.func @transform_3(%arg0: i32) -> (i32, i32) {
    %c0_i32 = arith.constant 0 : i32
    %c0_i32_0 = arith.constant 0 : i32
    %c0_i32_1 = arith.constant 0 : i32
    return %c0_i32, %c0_i32_0 : i32, i32
  }
  func.func @transform_4(%arg0: i32) -> (i32, i32) {
    %c0_i32 = arith.constant 0 : i32
    %c0_i32_0 = arith.constant 0 : i32
    %c0_i32_1 = arith.constant 0 : i32
    return %c0_i32, %c0_i32_0 : i32, i32
  }
  func.func @transform_5(%arg0: i32) -> (i32, i32) {
    %c0_i32 = arith.constant 0 : i32
    %c0_i32_0 = arith.constant 0 : i32
    %c0_i32_1 = arith.constant 0 : i32
    return %c0_i32, %c0_i32_0 : i32, i32
  }
  func.func @transform_6(%arg0: i32) -> (i32, i32) {
    %c0_i32 = arith.constant 0 : i32
    %c0_i32_0 = arith.constant 0 : i32
    %c0_i32_1 = arith.constant 0 : i32
    return %c0_i32, %c0_i32_0 : i32, i32
  }
  func.func @transform_7(%arg0: i32) -> (i32, i32) {
    %c0_i32 = arith.constant 0 : i32
    %c0_i32_0 = arith.constant 0 : i32
    return %arg0, %c0_i32 : i32, i32
  }
}

</mosaic_0001>

<llo_original>
// kernel: tpu_custom_call.1
$region0: #{tpu_custom_call.1}
  #allocation0 [shape = 'u32[]', space=smem, size = 0x4, offset = 0x4, fixed_abs, tag = 'smem constant byte address 0x4 - core index']
  #allocation1 [shape = 'u32[144,128]{1,0:T(1,128)}', space=vmem, size = 0x12000, scoped, tag = 'internal scratch']
  %s0 = inlined_call_operand.hbm [shape: f32[8,768], index: 0, kind: input, shape index: {}]
  %s1 = inlined_call_operand.hbm [shape: f32[8,24], index: 1, kind: input, shape index: {}]
  %s2 = inlined_call_operand.hbm [shape: f32[24,24], index: 2, kind: input, shape index: {}]
  %s3 = inlined_call_operand.hbm [shape: f32[768,768], index: 3, kind: input, shape index: {}]
  %s4 = inlined_call_operand.hbm [shape: f32[1,768], index: 4, kind: input, shape index: {}]
  %s5 = inlined_call_operand.vmem [shape: f32[768,24], index: 5, kind: input, shape index: {}]
  %s6 = inlined_call_operand.hbm [shape: f32[1,24], index: 6, kind: input, shape index: {}]
  %s7 = inlined_call_operand.hbm [shape: f32[8,24], index: 7, kind: output, shape index: {}]
  %s8 = sld [smem:[#allocation0]]
  $region62: #{tpu_custom_call.1} parent=0
    _
  %s10 = ssub.s32 1, %s8
  %s11 = scalar_select 0, %s10, %s8
  $region1: #{tpu_custom_call.1} parent=0
    #allocation2 [shape = 'u8[24576]{0}', space=vmem, size = 0x6000, scoped, tag = 'input window, operand 0, single buffered']
    #allocation3 [shape = 's32[1]{0}', space=sflag, size = 0x4, scoped, tag = 'scoped memory for tpu_custom_call.1']
    #allocation4 [shape = 's32[1]{0}', space=sflag, size = 0x4, scoped, tag = 'scoped memory for tpu_custom_call.1']
    #allocation5 [shape = 'u8[4096]{0}', space=vmem, size = 0x1000, scoped, tag = 'input window, operand 1, single buffered']
    #allocation6 [shape = 's32[1]{0}', space=sflag, size = 0x4, scoped, tag = 'scoped memory for tpu_custom_call.1']
    #allocation7 [shape = 'u8[12288]{0}', space=vmem, size = 0x3000, scoped, tag = 'input window, operand 2, single buffered']
    #allocation8 [shape = 'u8[2359296]{0}', space=vmem, size = 0x240000, scoped, tag = 'input window, operand 3, single buffered']
    #allocation9 [shape = 's32[1]{0}', space=sflag, size = 0x4, scoped, tag = 'scoped memory for tpu_custom_call.1']
    #allocation10 [shape = 'u8[3072]{0}', space=vmem, size = 0xc00, scoped, tag = 'input window, operand 4, single buffered']
    #allocation11 [shape = 'u8[512]{0}', space=vmem, size = 0x400, scoped, tag = 'input window, operand 6, single buffered']
    #allocation12 [shape = 's32[1]{0}', space=sflag, size = 0x4, scoped, tag = 'scoped memory for tpu_custom_call.1']
    #allocation13 [shape = 'u8[4096]{0}', space=vmem, size = 0x1000, scoped, tag = 'output window, operand 0, single buffered']
    %12 = vsyncpa [#allocation3], 0
    %13 = vsyncpa [#allocation6], 0
    %14 = vsyncpa [#allocation9], 0
    %15 = vsyncpa [#allocation12], 0
    %16 = vsyncpa [#allocation4], 0
    // Predicated region
    $region2: #{tpu_custom_call.1} parent=1 // pred_check
      _
    $region3: #{tpu_custom_call.1} parent=1 // pred_check_branch
      %18 = sbr.rel (0) target = $region5
    $region4: #{tpu_custom_call.1} parent=1 // pred_region
      %s20 = ssub.s32 768, 768
      %21 = vsyncadd [#allocation3], %s20
      %s23 = sshll.u32 [#allocation2], 4
      %s24 = int_to_ptr.vmem [resolvable:$true] %s23
      %26 = dma.hbm_to_vmem [thread:$0]  %s0, 768, %s24, [#allocation3]
    $region5: #{tpu_custom_call.1} parent=1 // pred_fallthru
      _
    // Predicated region
    $region6: #{tpu_custom_call.1} parent=1 // pred_check
      _
    $region7: #{tpu_custom_call.1} parent=1 // pred_check_branch
      %28 = sbr.rel (0) target = $region9
    $region8: #{tpu_custom_call.1} parent=1 // pred_region
      %s30 = ssub.s32 128, 128
      %31 = vsyncadd [#allocation6], %s30
      %s33 = sshll.u32 [#allocation5], 4
      %s34 = int_to_ptr.vmem [resolvable:$true] %s33
      %36 = dma.hbm_to_vmem [thread:$0]  %s1, 128, %s34, [#allocation6]
    $region9: #{tpu_custom_call.1} parent=1 // pred_fallthru
      _
    // Predicated region
    $region10: #{tpu_custom_call.1} parent=1 // pred_check
      _
    $region11: #{tpu_custom_call.1} parent=1 // pred_check_branch
      %38 = sbr.rel (0) target = $region13
    $region12: #{tpu_custom_call.1} parent=1 // pred_region
      %s40 = ssub.s32 384, 384
      %41 = vsyncadd [#allocation6], %s40
      %s42 = sshll.u32 [#allocation7], 4
      %s43 = int_to_ptr.vmem [resolvable:$true] %s42
      %48 = dma.hbm_to_vmem [thread:$0]  %s2, 384, %s43, [#allocation6], 128, 128, 8
    $region13: #{tpu_custom_call.1} parent=1 // pred_fallthru
      _
    // Predicated region
    $region14: #{tpu_custom_call.1} parent=1 // pred_check
      _
    $region15: #{tpu_custom_call.1} parent=1 // pred_check_branch
      %50 = sbr.rel (0) target = $region17
    $region16: #{tpu_custom_call.1} parent=1 // pred_region
      %s52 = ssub.s32 73728, 73728
      %53 = vsyncadd [#allocation9], %s52
      %s54 = sshll.u32 [#allocation8], 4
      %s55 = int_to_ptr.vmem [resolvable:$true] %s54
      %60 = dma.hbm_to_vmem [thread:$0]  %s3, 73728, %s55, [#allocation9], 768, 768, 48
    $region17: #{tpu_custom_call.1} parent=1 // pred_fallthru
      _
    // Predicated region
    $region18: #{tpu_custom_call.1} parent=1 // pred_check
      _
    $region19: #{tpu_custom_call.1} parent=1 // pred_check_branch
      %62 = sbr.rel (0) target = $region21
    $region20: #{tpu_custom_call.1} parent=1 // pred_region
      %s64 = ssub.s32 96, 96
      %65 = vsyncadd [#allocation9], %s64
      %s67 = sshll.u32 [#allocation10], 4
      %s68 = int_to_ptr.vmem [resolvable:$true] %s67
      %70 = dma.hbm_to_vmem [thread:$0]  %s4, 96, %s68, [#allocation9]
    $region21: #{tpu_custom_call.1} parent=1 // pred_fallthru
      _
    // Predicated region
    $region22: #{tpu_custom_call.1} parent=1 // pred_check
      _
    $region23: #{tpu_custom_call.1} parent=1 // pred_check_branch
      %72 = sbr.rel (0) target = $region25
    $region24: #{tpu_custom_call.1} parent=1 // pred_region
      _
    $region25: #{tpu_custom_call.1} parent=1 // pred_fallthru
      _
    // Predicated region
    $region26: #{tpu_custom_call.1} parent=1 // pred_check
      _
    $region27: #{tpu_custom_call.1} parent=1 // pred_check_branch
      %74 = sbr.rel (0) target = $region29
    $region28: #{tpu_custom_call.1} parent=1 // pred_region
      %s76 = ssub.s32 16, 16
      %77 = vsyncadd [#allocation12], %s76
      %s79 = sshll.u32 [#allocation11], 4
      %s80 = int_to_ptr.vmem [resolvable:$true] %s79
      %82 = dma.hbm_to_vmem [thread:$0]  %s6, 16, %s80, [#allocation12]
    $region29: #{tpu_custom_call.1} parent=1 // pred_fallthru
      _
    // Predicated region
    $region30: #{tpu_custom_call.1} parent=1 // pred_check
      _
    $region31: #{tpu_custom_call.1} parent=1 // pred_check_branch
      %84 = sbr.rel (0) target = $region33
    $region32: #{tpu_custom_call.1} parent=1 // pred_region
      %85 = dma.done [#allocation3], 768
    $region33: #{tpu_custom_call.1} parent=1 // pred_fallthru
      _
    // Predicated region
    $region34: #{tpu_custom_call.1} parent=1 // pred_check
      _
    $region35: #{tpu_custom_call.1} parent=1 // pred_check_branch
      %87 = sbr.rel (0) target = $region37
    $region36: #{tpu_custom_call.1} parent=1 // pred_region
      %88 = dma.done [#allocation6], 128
    $region37: #{tpu_custom_call.1} parent=1 // pred_fallthru
      _
    // Predicated region
    $region38: #{tpu_custom_call.1} parent=1 // pred_check
      _
    $region39: #{tpu_custom_call.1} parent=1 // pred_check_branch
      %90 = sbr.rel (0) target = $region41
    $region40: #{tpu_custom_call.1} parent=1 // pred_region
      %91 = dma.done [#allocation6], 384
    $region41: #{tpu_custom_call.1} parent=1 // pred_fallthru
      _
    // Predicated region
    $region42: #{tpu_custom_call.1} parent=1 // pred_check
      _
    $region43: #{tpu_custom_call.1} parent=1 // pred_check_branch
      %93 = sbr.rel (0) target = $region45
    $region44: #{tpu_custom_call.1} parent=1 // pred_region
      %94 = dma.done [#allocation9], 73728
    $region45: #{tpu_custom_call.1} parent=1 // pred_fallthru
      _
    // Predicated region
    $region46: #{tpu_custom_call.1} parent=1 // pred_check
      _
    $region47: #{tpu_custom_call.1} parent=1 // pred_check_branch
      %96 = sbr.rel (0) target = $region49
    $region48: #{tpu_custom_call.1} parent=1 // pred_region
      %97 = dma.done [#allocation9], 96
    $region49: #{tpu_custom_call.1} parent=1 // pred_fallthru
      _
    // Predicated region
    $region50: #{tpu_custom_call.1} parent=1 // pred_check
      _
    $region51: #{tpu_custom_call.1} parent=1 // pred_check_branch
      %99 = sbr.rel (0) target = $region53
    $region52: #{tpu_custom_call.1} parent=1 // pred_region
      %100 = dma.done [#allocation12], 16
    $region53: #{tpu_custom_call.1} parent=1 // pred_fallthru
      _
    %v101 = vld [vmem:[#allocation2] sm:$0xff]
    %v102 = vld [vmem:[#allocation2 + $0x8] sm:$0xff]
    %v103 = vld [vmem:[#allocation2 + $0x10] sm:$0xff]
    %v104 = vld [vmem:[#allocation2 + $0x18] sm:$0xff]
    %v105 = vld [vmem:[#allocation2 + $0x20] sm:$0xff]
    %v106 = vld [vmem:[#allocation2 + $0x28] sm:$0xff]
    %v107 = vmax.f32 %v101, 0.0
    %v108 = vmax.f32 %v102, 0.0
    %v109 = vmax.f32 %v103, 0.0
    %v110 = vmax.f32 %v104, 0.0
    %v111 = vmax.f32 %v105, 0.0
    %v112 = vmax.f32 %v106, 0.0
    %v113 = vld [vmem:[#allocation8] sm:$0xff]
    %v114 = vld [vmem:[#allocation8 + $0x8] sm:$0xff]
    %v115 = vld [vmem:[#allocation8 + $0x10] sm:$0xff]
    %v116 = vld [vmem:[#allocation8 + $0x18] sm:$0xff]
    %v117 = vld [vmem:[#allocation8 + $0x20] sm:$0xff]
    %v118 = vld [vmem:[#allocation8 + $0x28] sm:$0xff]
    %v119 = vld [vmem:[#allocation8 + $0x30] sm:$0xff]
    %v120 = vld [vmem:[#allocation8 + $0x38] sm:$0xff]
    %v121 = vld [vmem:[#allocation8 + $0x40] sm:$0xff]
    %v122 = vld [vmem:[#allocation8 + $0x48] sm:$0xff]
    %v123 = vld [vmem:[#allocation8 + $0x50] sm:$0xff]
    %v124 = vld [vmem:[#allocation8 + $0x58] sm:$0xff]
    %v125 = vld [vmem:[#allocation8 + $0x60] sm:$0xff]
    %v126 = vld [vmem:[#allocation8 + $0x68] sm:$0xff]
    %v127 = vld [vmem:[#allocation8 + $0x70] sm:$0xff]
    %v128 = vld [vmem:[#allocation8 + $0x78] sm:$0xff]
    %v129 = vld [vmem:[#allocation8 + $0x80] sm:$0xff]
    %v130 = vld [vmem:[#allocation8 + $0x88] sm:$0xff]
    %v131 = vld [vmem:[#allocation8 + $0x90] sm:$0xff]
    %v132 = vld [vmem:[#allocation8 + $0x98] sm:$0xff]
    %v133 = vld [vmem:[#allocation8 + $0xa0] sm:$0xff]
    %v134 = vld [vmem:[#allocation8 + $0xa8] sm:$0xff]
    %v135 = vld [vmem:[#allocation8 + $0xb0] sm:$0xff]
    %v136 = vld [vmem:[#allocation8 + $0xb8] sm:$0xff]
    %v137 = vld [vmem:[#allocation8 + $0xc0] sm:$0xff]
    %v138 = vld [vmem:[#allocation8 + $0xc8] sm:$0xff]
    %v139 = vld [vmem:[#allocation8 + $0xd0] sm:$0xff]
    %v140 = vld [vmem:[#allocation8 + $0xd8] sm:$0xff]
    %v141 = vld [vmem:[#allocation8 + $0xe0] sm:$0xff]
    %v142 = vld [vmem:[#allocation8 + $0xe8] sm:$0xff]
    %v143 = vld [vmem:[#allocation8 + $0xf0] sm:$0xff]
    %v144 = vld [vmem:[#allocation8 + $0xf8] sm:$0xff]
    %v145 = vld [vmem:[#allocation8 + $0x100] sm:$0xff]
    %v146 = vld [vmem:[#allocation8 + $0x108] sm:$0xff]
    %v147 = vld [vmem:[#allocation8 + $0x110] sm:$0xff]
    %v148 = vld [vmem:[#allocation8 + $0x118] sm:$0xff]
    %v149 = vld [vmem:[#allocation8 + $0x120] sm:$0xff]
    %v150 = vld [vmem:[#allocation8 + $0x128] sm:$0xff]
    %v151 = vld [vmem:[#allocation8 + $0x130] sm:$0xff]
    %v152 = vld [vmem:[#allocation8 + $0x138] sm:$0xff]
    %v153 = vld [vmem:[#allocation8 + $0x140] sm:$0xff]
    %v154 = vld [vmem:[#allocation8 + $0x148] sm:$0xff]
    %v155 = vld [vmem:[#allocation8 + $0x150] sm:$0xff]
    %v156 = vld [vmem:[#allocation8 + $0x158] sm:$0xff]
    %v157 = vld [vmem:[#allocation8 + $0x160] sm:$0xff]
    %v158 = vld [vmem:[#allocation8 + $0x168] sm:$0xff]
    %v159 = vld [vmem:[#allocation8 + $0x170] sm:$0xff]
    %v160 = vld [vmem:[#allocation8 + $0x178] sm:$0xff]
    %v161 = vld [vmem:[#allocation8 + $0x180] sm:$0xff]
    %v162 = vld [vmem:[#allocation8 + $0x188] sm:$0xff]
    %v163 = vld [vmem:[#allocation8 + $0x190] sm:$0xff]
    %v164 = vld [vmem:[#allocation8 + $0x198] sm:$0xff]
    %v165 = vld [vmem:[#allocation8 + $0x1a0] sm:$0xff]
    %v166 = vld [vmem:[#allocation8 + $0x1a8] sm:$0xff]
    %v167 = vld [vmem:[#allocation8 + $0x1b0] sm:$0xff]
    %v168 = vld [vmem:[#allocation8 + $0x1b8] sm:$0xff]
    %v169 = vld [vmem:[#allocation8 + $0x1c0] sm:$0xff]
    %v170 = vld [vmem:[#allocation8 + $0x1c8] sm:$0xff]
    %v171 = vld [vmem:[#allocation8 + $0x1d0] sm:$0xff]
    %v172 = vld [vmem:[#allocation8 + $0x1d8] sm:$0xff]
    %v173 = vld [vmem:[#allocation8 + $0x1e0] sm:$0xff]
    %v174 = vld [vmem:[#allocation8 + $0x1e8] sm:$0xff]
    %v175 = vld [vmem:[#allocation8 + $0x1f0] sm:$0xff]
    %v176 = vld [vmem:[#allocation8 + $0x1f8] sm:$0xff]
    %v177 = vld [vmem:[#allocation8 + $0x200] sm:$0xff]
    %v178 = vld [vmem:[#allocation8 + $0x208] sm:$0xff]
    %v179 = vld [vmem:[#allocation8 + $0x210] sm:$0xff]
    %v180 = vld [vmem:[#allocation8 + $0x218] sm:$0xff]
    %v181 = vld [vmem:[#allocation8 + $0x220] sm:$0xff]
    %v182 = vld [vmem:[#allocation8 + $0x228] sm:$0xff]
    %v183 = vld [vmem:[#allocation8 + $0x230] sm:$0xff]
    %v184 = vld [vmem:[#allocation8 + $0x238] sm:$0xff]
    %v185 = vld [vmem:[#allocation8 + $0x240] sm:$0xff]
    %v186 = vld [vmem:[#allocation8 + $0x248] sm:$0xff]
    %v187 = vld [vmem:[#allocation8 + $0x250] sm:$0xff]
    %v188 = vld [vmem:[#allocation8 + $0x258] sm:$0xff]
    %v189 = vld [vmem:[#allocation8 + $0x260] sm:$0xff]
    %v190 = vld [vmem:[#allocation8 + $0x268] sm:$0xff]
    %v191 = vld [vmem:[#allocation8 + $0x270] sm:$0xff]
    %v192 = vld [vmem:[#allocation8 + $0x278] sm:$0xff]
    %v193 = vld [vmem:[#allocation8 + $0x280] sm:$0xff]
    %v194 = vld [vmem:[#allocation8 + $0x288] sm:$0xff]
    %v195 = vld [vmem:[#allocation8 + $0x290] sm:$0xff]
    %v196 = vld [vmem:[#allocation8 + $0x298] sm:$0xff]
    %v197 = vld [vmem:[#allocation8 + $0x2a0] sm:$0xff]
    %v198 = vld [vmem:[#allocation8 + $0x2a8] sm:$0xff]
    %v199 = vld [vmem:[#allocation8 + $0x2b0] sm:$0xff]
    %v200 = vld [vmem:[#allocation8 + $0x2b8] sm:$0xff]
    %v201 = vld [vmem:[#allocation8 + $0x2c0] sm:$0xff]
    %v202 = vld [vmem:[#allocation8 + $0x2c8] sm:$0xff]
    %v203 = vld [vmem:[#allocation8 + $0x2d0] sm:$0xff]
    %v204 = vld [vmem:[#allocation8 + $0x2d8] sm:$0xff]
    %v205 = vld [vmem:[#allocation8 + $0x2e0] sm:$0xff]
    %v206 = vld [vmem:[#allocation8 + $0x2e8] sm:$0xff]
    %v207 = vld [vmem:[#allocation8 + $0x2f0] sm:$0xff]
    %v208 = vld [vmem:[#allocation8 + $0x2f8] sm:$0xff]
    %v209 = vld [vmem:[#allocation8 + $0x300] sm:$0xff]
    %v210 = vld [vmem:[#allocation8 + $0x308] sm:$0xff]
    %v211 = vld [vmem:[#allocation8 + $0x310] sm:$0xff]
    %v212 = vld [vmem:[#allocation8 + $0x318] sm:$0xff]
    %v213 = vld [vmem:[#allocation8 + $0x320] sm:$0xff]
    %v214 = vld [vmem:[#allocation8 + $0x328] sm:$0xff]
    %v215 = vld [vmem:[#allocation8 + $0x330] sm:$0xff]
    %v216 = vld [vmem:[#allocation8 + $0x338] sm:$0xff]
    %v217 = vld [vmem:[#allocation8 + $0x340] sm:$0xff]
    %v218 = vld [vmem:[#allocation8 + $0x348] sm:$0xff]
    %v219 = vld [vmem:[#allocation8 + $0x350] sm:$0xff]
    %v220 = vld [vmem:[#allocation8 + $0x358] sm:$0xff]
    %v221 = vld [vmem:[#allocation8 + $0x360] sm:$0xff]
    %v222 = vld [vmem:[#allocation8 + $0x368] sm:$0xff]
    %v223 = vld [vmem:[#allocation8 + $0x370] sm:$0xff]
    %v224 = vld [vmem:[#allocation8 + $0x378] sm:$0xff]
    %v225 = vld [vmem:[#allocation8 + $0x380] sm:$0xff]
    %v226 = vld [vmem:[#allocation8 + $0x388] sm:$0xff]
    %v227 = vld [vmem:[#allocation8 + $0x390] sm:$0xff]
    %v228 = vld [vmem:[#allocation8 + $0x398] sm:$0xff]
    %v229 = vld [vmem:[#allocation8 + $0x3a0] sm:$0xff]
    %v230 = vld [vmem:[#allocation8 + $0x3a8] sm:$0xff]
    %v231 = vld [vmem:[#allocation8 + $0x3b0] sm:$0xff]
    %v232 = vld [vmem:[#allocation8 + $0x3b8] sm:$0xff]
    %v233 = vld [vmem:[#allocation8 + $0x3c0] sm:$0xff]
    %v234 = vld [vmem:[#allocation8 + $0x3c8] sm:$0xff]
    %v235 = vld [vmem:[#allocation8 + $0x3d0] sm:$0xff]
    %v236 = vld [vmem:[#allocation8 + $0x3d8] sm:$0xff]
    %v237 = vld [vmem:[#allocation8 + $0x3e0] sm:$0xff]
    %v238 = vld [vmem:[#allocation8 + $0x3e8] sm:$0xff]
    %v239 = vld [vmem:[#allocation8 + $0x3f0] sm:$0xff]
    %v240 = vld [vmem:[#allocation8 + $0x3f8] sm:$0xff]
    %v241 = vld [vmem:[#allocation8 + $0x400] sm:$0xff]
    %v242 = vld [vmem:[#allocation8 + $0x408] sm:$0xff]
    %v243 = vld [vmem:[#allocation8 + $0x410] sm:$0xff]
    %v244 = vld [vmem:[#allocation8 + $0x418] sm:$0xff]
    %v245 = vld [vmem:[#allocation8 + $0x420] sm:$0xff]
    %v246 = vld [vmem:[#allocation8 + $0x428] sm:$0xff]
    %v247 = vld [vmem:[#allocation8 + $0x430] sm:$0xff]
    %v248 = vld [vmem:[#allocation8 + $0x438] sm:$0xff]
    %v249 = vld [vmem:[#allocation8 + $0x440] sm:$0xff]
    %v250 = vld [vmem:[#allocation8 + $0x448] sm:$0xff]
    %v251 = vld [vmem:[#allocation8 + $0x450] sm:$0xff]
    %v252 = vld [vmem:[#allocation8 + $0x458] sm:$0xff]
    %v253 = vld [vmem:[#allocation8 + $0x460] sm:$0xff]
    %v254 = vld [vmem:[#allocation8 + $0x468] sm:$0xff]
    %v255 = vld [vmem:[#allocation8 + $0x470] sm:$0xff]
    %v256 = vld [vmem:[#allocation8 + $0x478] sm:$0xff]
    %v257 = vld [vmem:[#allocation8 + $0x480] sm:$0xff]
    %v258 = vld [vmem:[#allocation8 + $0x488] sm:$0xff]
    %v259 = vld [vmem:[#allocation8 + $0x490] sm:$0xff]
    %v260 = vld [vmem:[#allocation8 + $0x498] sm:$0xff]
    %v261 = vld [vmem:[#allocation8 + $0x4a0] sm:$0xff]
    %v262 = vld [vmem:[#allocation8 + $0x4a8] sm:$0xff]
    %v263 = vld [vmem:[#allocation8 + $0x4b0] sm:$0xff]
    %v264 = vld [vmem:[#allocation8 + $0x4b8] sm:$0xff]
    %v265 = vld [vmem:[#allocation8 + $0x4c0] sm:$0xff]
    %v266 = vld [vmem:[#allocation8 + $0x4c8] sm:$0xff]
    %v267 = vld [vmem:[#allocation8 + $0x4d0] sm:$0xff]
    %v268 = vld [vmem:[#allocation8 + $0x4d8] sm:$0xff]
    %v269 = vld [vmem:[#allocation8 + $0x4e0] sm:$0xff]
    %v270 = vld [vmem:[#allocation8 + $0x4e8] sm:$0xff]
    %v271 = vld [vmem:[#allocation8 + $0x4f0] sm:$0xff]
    %v272 = vld [vmem:[#allocation8 + $0x4f8] sm:$0xff]
    %v273 = vld [vmem:[#allocation8 + $0x500] sm:$0xff]
    %v274 = vld [vmem:[#allocation8 + $0x508] sm:$0xff]
    %v275 = vld [vmem:[#allocation8 + $0x510] sm:$0xff]
    %v276 = vld [vmem:[#allocation8 + $0x518] sm:$0xff]
    %v277 = vld [vmem:[#allocation8 + $0x520] sm:$0xff]
    %v278 = vld [vmem:[#allocation8 + $0x528] sm:$0xff]
    %v279 = vld [vmem:[#allocation8 + $0x530] sm:$0xff]
    %v280 = vld [vmem:[#allocation8 + $0x538] sm:$0xff]
    %v281 = vld [vmem:[#allocation8 + $0x540] sm:$0xff]
    %v282 = vld [vmem:[#allocation8 + $0x548] sm:$0xff]
    %v283 = vld [vmem:[#allocation8 + $0x550] sm:$0xff]
    %v284 = vld [vmem:[#allocation8 + $0x558] sm:$0xff]
    %v285 = vld [vmem:[#allocation8 + $0x560] sm:$0xff]
    %v286 = vld [vmem:[#allocation8 + $0x568] sm:$0xff]
    %v287 = vld [vmem:[#allocation8 + $0x570] sm:$0xff]
    %v288 = vld [vmem:[#allocation8 + $0x578] sm:$0xff]
    %v289 = vld [vmem:[#allocation8 + $0x580] sm:$0xff]
    %v290 = vld [vmem:[#allocation8 + $0x588] sm:$0xff]
    %v291 = vld [vmem:[#allocation8 + $0x590] sm:$0xff]
    %v292 = vld [vmem:[#allocation8 + $0x598] sm:$0xff]
    %v293 = vld [vmem:[#allocation8 + $0x5a0] sm:$0xff]
    %v294 = vld [vmem:[#allocation8 + $0x5a8] sm:$0xff]
    %v295 = vld [vmem:[#allocation8 + $0x5b0] sm:$0xff]
    %v296 = vld [vmem:[#allocation8 + $0x5b8] sm:$0xff]
    %v297 = vld [vmem:[#allocation8 + $0x5c0] sm:$0xff]
    %v298 = vld [vmem:[#allocation8 + $0x5c8] sm:$0xff]
    %v299 = vld [vmem:[#allocation8 + $0x5d0] sm:$0xff]
    %v300 = vld [vmem:[#allocation8 + $0x5d8] sm:$0xff]
    %v301 = vld [vmem:[#allocation8 + $0x5e0] sm:$0xff]
    %v302 = vld [vmem:[#allocation8 + $0x5e8] sm:$0xff]
    %v303 = vld [vmem:[#allocation8 + $0x5f0] sm:$0xff]
    %v304 = vld [vmem:[#allocation8 + $0x5f8] sm:$0xff]
    %v305 = vld [vmem:[#allocation8 + $0x600] sm:$0xff]
    %v306 = vld [vmem:[#allocation8 + $0x608] sm:$0xff]
    %v307 = vld [vmem:[#allocation8 + $0x610] sm:$0xff]
    %v308 = vld [vmem:[#allocation8 + $0x618] sm:$0xff]
    %v309 = vld [vmem:[#allocation8 + $0x620] sm:$0xff]
    %v310 = vld [vmem:[#allocation8 + $0x628] sm:$0xff]
    %v311 = vld [vmem:[#allocation8 + $0x630] sm:$0xff]
    %v312 = vld [vmem:[#allocation8 + $0x638] sm:$0xff]
    %v313 = vld [vmem:[#allocation8 + $0x640] sm:$0xff]
    %v314 = vld [vmem:[#allocation8 + $0x648] sm:$0xff]
    %v315 = vld [vmem:[#allocation8 + $0x650] sm:$0xff]
    %v316 = vld [vmem:[#allocation8 + $0x658] sm:$0xff]
    %v317 = vld [vmem:[#allocation8 + $0x660] sm:$0xff]
    %v318 = vld [vmem:[#allocation8 + $0x668] sm:$0xff]
    %v319 = vld [vmem:[#allocation8 + $0x670] sm:$0xff]
    %v320 = vld [vmem:[#allocation8 + $0x678] sm:$0xff]
    %v321 = vld [vmem:[#allocation8 + $0x680] sm:$0xff]
    %v322 = vld [vmem:[#allocation8 + $0x688] sm:$0xff]
    %v323 = vld [vmem:[#allocation8 + $0x690] sm:$0xff]
    %v324 = vld [vmem:[#allocation8 + $0x698] sm:$0xff]
    %v325 = vld [vmem:[#allocation8 + $0x6a0] sm:$0xff]
    %v326 = vld [vmem:[#allocation8 + $0x6a8] sm:$0xff]
    %v327 = vld [vmem:[#allocation8 + $0x6b0] sm:$0xff]
    %v328 = vld [vmem:[#allocation8 + $0x6b8] sm:$0xff]
    %v329 = vld [vmem:[#allocation8 + $0x6c0] sm:$0xff]
    %v330 = vld [vmem:[#allocation8 + $0x6c8] sm:$0xff]
    %v331 = vld [vmem:[#allocation8 + $0x6d0] sm:$0xff]
    %v332 = vld [vmem:[#allocation8 + $0x6d8] sm:$0xff]
    %v333 = vld [vmem:[#allocation8 + $0x6e0] sm:$0xff]
    %v334 = vld [vmem:[#allocation8 + $0x6e8] sm:$0xff]
    %v335 = vld [vmem:[#allocation8 + $0x6f0] sm:$0xff]
    %v336 = vld [vmem:[#allocation8 + $0x6f8] sm:$0xff]
    %v337 = vld [vmem:[#allocation8 + $0x700] sm:$0xff]
    %v338 = vld [vmem:[#allocation8 + $0x708] sm:$0xff]
    %v339 = vld [vmem:[#allocation8 + $0x710] sm:$0xff]
    %v340 = vld [vmem:[#allocation8 + $0x718] sm:$0xff]
    %v341 = vld [vmem:[#allocation8 + $0x720] sm:$0xff]
    %v342 = vld [vmem:[#allocation8 + $0x728] sm:$0xff]
    %v343 = vld [vmem:[#allocation8 + $0x730] sm:$0xff]
    %v344 = vld [vmem:[#allocation8 + $0x738] sm:$0xff]
    %v345 = vld [vmem:[#allocation8 + $0x740] sm:$0xff]
    %v346 = vld [vmem:[#allocation8 + $0x748] sm:$0xff]
    %v347 = vld [vmem:[#allocation8 + $0x750] sm:$0xff]
    %v348 = vld [vmem:[#allocation8 + $0x758] sm:$0xff]
    %v349 = vld [vmem:[#allocation8 + $0x760] sm:$0xff]
    %v350 = vld [vmem:[#allocation8 + $0x768] sm:$0xff]
    %v351 = vld [vmem:[#allocation8 + $0x770] sm:$0xff]
    %v352 = vld [vmem:[#allocation8 + $0x778] sm:$0xff]
    %v353 = vld [vmem:[#allocation8 + $0x780] sm:$0xff]
    %v354 = vld [vmem:[#allocation8 + $0x788] sm:$0xff]
    %v355 = vld [vmem:[#allocation8 + $0x790] sm:$0xff]
    %v356 = vld [vmem:[#allocation8 + $0x798] sm:$0xff]
    %v357 = vld [vmem:[#allocation8 + $0x7a0] sm:$0xff]
    %v358 = vld [vmem:[#allocation8 + $0x7a8] sm:$0xff]
    %v359 = vld [vmem:[#allocation8 + $0x7b0] sm:$0xff]
    %v360 = vld [vmem:[#allocation8 + $0x7b8] sm:$0xff]
    %v361 = vld [vmem:[#allocation8 + $0x7c0] sm:$0xff]
    %v362 = vld [vmem:[#allocation8 + $0x7c8] sm:$0xff]
    %v363 = vld [vmem:[#allocation8 + $0x7d0] sm:$0xff]
    %v364 = vld [vmem:[#allocation8 + $0x7d8] sm:$0xff]
    %v365 = vld [vmem:[#allocation8 + $0x7e0] sm:$0xff]
    %v366 = vld [vmem:[#allocation8 + $0x7e8] sm:$0xff]
    %v367 = vld [vmem:[#allocation8 + $0x7f0] sm:$0xff]
    %v368 = vld [vmem:[#allocation8 + $0x7f8] sm:$0xff]
    %v369 = vld [vmem:[#allocation8 + $0x800] sm:$0xff]
    %v370 = vld [vmem:[#allocation8 + $0x808] sm:$0xff]
    %v371 = vld [vmem:[#allocation8 + $0x810] sm:$0xff]
    %v372 = vld [vmem:[#allocation8 + $0x818] sm:$0xff]
    %v373 = vld [vmem:[#allocation8 + $0x820] sm:$0xff]
    %v374 = vld [vmem:[#allocation8 + $0x828] sm:$0xff]
    %v375 = vld [vmem:[#allocation8 + $0x830] sm:$0xff]
    %v376 = vld [vmem:[#allocation8 + $0x838] sm:$0xff]
    %v377 = vld [vmem:[#allocation8 + $0x840] sm:$0xff]
    %v378 = vld [vmem:[#allocation8 + $0x848] sm:$0xff]
    %v379 = vld [vmem:[#allocation8 + $0x850] sm:$0xff]
    %v380 = vld [vmem:[#allocation8 + $0x858] sm:$0xff]
    %v381 = vld [vmem:[#allocation8 + $0x860] sm:$0xff]
    %v382 = vld [vmem:[#allocation8 + $0x868] sm:$0xff]
    %v383 = vld [vmem:[#allocation8 + $0x870] sm:$0xff]
    %v384 = vld [vmem:[#allocation8 + $0x878] sm:$0xff]
    %v385 = vld [vmem:[#allocation8 + $0x880] sm:$0xff]
    %v386 = vld [vmem:[#allocation8 + $0x888] sm:$0xff]
    %v387 = vld [vmem:[#allocation8 + $0x890] sm:$0xff]
    %v388 = vld [vmem:[#allocation8 + $0x898] sm:$0xff]
    %v389 = vld [vmem:[#allocation8 + $0x8a0] sm:$0xff]
    %v390 = vld [vmem:[#allocation8 + $0x8a8] sm:$0xff]
    %v391 = vld [vmem:[#allocation8 + $0x8b0] sm:$0xff]
    %v392 = vld [vmem:[#allocation8 + $0x8b8] sm:$0xff]
    %v393 = vld [vmem:[#allocation8 + $0x8c0] sm:$0xff]
    %v394 = vld [vmem:[#allocation8 + $0x8c8] sm:$0xff]
    %v395 = vld [vmem:[#allocation8 + $0x8d0] sm:$0xff]
    %v396 = vld [vmem:[#allocation8 + $0x8d8] sm:$0xff]
    %v397 = vld [vmem:[#allocation8 + $0x8e0] sm:$0xff]
    %v398 = vld [vmem:[#allocation8 + $0x8e8] sm:$0xff]
    %v399 = vld [vmem:[#allocation8 + $0x8f0] sm:$0xff]
    %v400 = vld [vmem:[#allocation8 + $0x8f8] sm:$0xff]
    %v401 = vld [vmem:[#allocation8 + $0x900] sm:$0xff]
    %v402 = vld [vmem:[#allocation8 + $0x908] sm:$0xff]
    %v403 = vld [vmem:[#allocation8 + $0x910] sm:$0xff]
    %v404 = vld [vmem:[#allocation8 + $0x918] sm:$0xff]
    %v405 = vld [vmem:[#allocation8 + $0x920] sm:$0xff]
    %v406 = vld [vmem:[#allocation8 + $0x928] sm:$0xff]
    %v407 = vld [vmem:[#allocation8 + $0x930] sm:$0xff]
    %v408 = vld [vmem:[#allocation8 + $0x938] sm:$0xff]
    %v409 = vld [vmem:[#allocation8 + $0x940] sm:$0xff]
    %v410 = vld [vmem:[#allocation8 + $0x948] sm:$0xff]
    %v411 = vld [vmem:[#allocation8 + $0x950] sm:$0xff]
    %v412 = vld [vmem:[#allocation8 + $0x958] sm:$0xff]
    %v413 = vld [vmem:[#allocation8 + $0x960] sm:$0xff]
    %v414 = vld [vmem:[#allocation8 + $0x968] sm:$0xff]
    %v415 = vld [vmem:[#allocation8 + $0x970] sm:$0xff]
    %v416 = vld [vmem:[#allocation8 + $0x978] sm:$0xff]
    %v417 = vld [vmem:[#allocation8 + $0x980] sm:$0xff]
    %v418 = vld [vmem:[#allocation8 + $0x988] sm:$0xff]
    %v419 = vld [vmem:[#allocation8 + $0x990] sm:$0xff]
    %v420 = vld [vmem:[#allocation8 + $0x998] sm:$0xff]
    %v421 = vld [vmem:[#allocation8 + $0x9a0] sm:$0xff]
    %v422 = vld [vmem:[#allocation8 + $0x9a8] sm:$0xff]
    %v423 = vld [vmem:[#allocation8 + $0x9b0] sm:$0xff]
    %v424 = vld [vmem:[#allocation8 + $0x9b8] sm:$0xff]
    %v425 = vld [vmem:[#allocation8 + $0x9c0] sm:$0xff]
    %v426 = vld [vmem:[#allocation8 + $0x9c8] sm:$0xff]
    %v427 = vld [vmem:[#allocation8 + $0x9d0] sm:$0xff]
    %v428 = vld [vmem:[#allocation8 + $0x9d8] sm:$0xff]
    %v429 = vld [vmem:[#allocation8 + $0x9e0] sm:$0xff]
    %v430 = vld [vmem:[#allocation8 + $0x9e8] sm:$0xff]
    %v431 = vld [vmem:[#allocation8 + $0x9f0] sm:$0xff]
    %v432 = vld [vmem:[#allocation8 + $0x9f8] sm:$0xff]
    %v433 = vld [vmem:[#allocation8 + $0xa00] sm:$0xff]
    %v434 = vld [vmem:[#allocation8 + $0xa08] sm:$0xff]
    %v435 = vld [vmem:[#allocation8 + $0xa10] sm:$0xff]
    %v436 = vld [vmem:[#allocation8 + $0xa18] sm:$0xff]
    %v437 = vld [vmem:[#allocation8 + $0xa20] sm:$0xff]
    %v438 = vld [vmem:[#allocation8 + $0xa28] sm:$0xff]
    %v439 = vld [vmem:[#allocation8 + $0xa30] sm:$0xff]
    %v440 = vld [vmem:[#allocation8 + $0xa38] sm:$0xff]
    %v441 = vld [vmem:[#allocation8 + $0xa40] sm:$0xff]
    %v442 = vld [vmem:[#allocation8 + $0xa48] sm:$0xff]
    %v443 = vld [vmem:[#allocation8 + $0xa50] sm:$0xff]
    %v444 = vld [vmem:[#allocation8 + $0xa58] sm:$0xff]
    %v445 = vld [vmem:[#allocation8 + $0xa60] sm:$0xff]
    %v446 = vld [vmem:[#allocation8 + $0xa68] sm:$0xff]
    %v447 = vld [vmem:[#allocation8 + $0xa70] sm:$0xff]
    %v448 = vld [vmem:[#allocation8 + $0xa78] sm:$0xff]
    %v449 = vld [vmem:[#allocation8 + $0xa80] sm:$0xff]
    %v450 = vld [vmem:[#allocation8 + $0xa88] sm:$0xff]
    %v451 = vld [vmem:[#allocation8 + $0xa90] sm:$0xff]
    %v452 = vld [vmem:[#allocation8 + $0xa98] sm:$0xff]
    %v453 = vld [vmem:[#allocation8 + $0xaa0] sm:$0xff]
    %v454 = vld [vmem:[#allocation8 + $0xaa8] sm:$0xff]
    %v455 = vld [vmem:[#allocation8 + $0xab0] sm:$0xff]
    %v456 = vld [vmem:[#allocation8 + $0xab8] sm:$0xff]
    %v457 = vld [vmem:[#allocation8 + $0xac0] sm:$0xff]
    %v458 = vld [vmem:[#allocation8 + $0xac8] sm:$0xff]
    %v459 = vld [vmem:[#allocation8 + $0xad0] sm:$0xff]
    %v460 = vld [vmem:[#allocation8 + $0xad8] sm:$0xff]
    %v461 = vld [vmem:[#allocation8 + $0xae0] sm:$0xff]
    %v462 = vld [vmem:[#allocation8 + $0xae8] sm:$0xff]
    %v463 = vld [vmem:[#allocation8 + $0xaf0] sm:$0xff]
    %v464 = vld [vmem:[#allocation8 + $0xaf8] sm:$0xff]
    %v465 = vld [vmem:[#allocation8 + $0xb00] sm:$0xff]
    %v466 = vld [vmem:[#allocation8 + $0xb08] sm:$0xff]
    %v467 = vld [vmem:[#allocation8 + $0xb10] sm:$0xff]
    %v468 = vld [vmem:[#allocation8 + $0xb18] sm:$0xff]
    %v469 = vld [vmem:[#allocation8 + $0xb20] sm:$0xff]
    %v470 = vld [vmem:[#allocation8 + $0xb28] sm:$0xff]
    %v471 = vld [vmem:[#allocation8 + $0xb30] sm:$0xff]
    %v472 = vld [vmem:[#allocation8 + $0xb38] sm:$0xff]
    %v473 = vld [vmem:[#allocation8 + $0xb40] sm:$0xff]
    %v474 = vld [vmem:[#allocation8 + $0xb48] sm:$0xff]
    %v475 = vld [vmem:[#allocation8 + $0xb50] sm:$0xff]
    %v476 = vld [vmem:[#allocation8 + $0xb58] sm:$0xff]
    %v477 = vld [vmem:[#allocation8 + $0xb60] sm:$0xff]
    %v478 = vld [vmem:[#allocation8 + $0xb68] sm:$0xff]
    %v479 = vld [vmem:[#allocation8 + $0xb70] sm:$0xff]
    %v480 = vld [vmem:[#allocation8 + $0xb78] sm:$0xff]
    %v481 = vld [vmem:[#allocation8 + $0xb80] sm:$0xff]
    %v482 = vld [vmem:[#allocation8 + $0xb88] sm:$0xff]
    %v483 = vld [vmem:[#allocation8 + $0xb90] sm:$0xff]
    %v484 = vld [vmem:[#allocation8 + $0xb98] sm:$0xff]
    %v485 = vld [vmem:[#allocation8 + $0xba0] sm:$0xff]
    %v486 = vld [vmem:[#allocation8 + $0xba8] sm:$0xff]
    %v487 = vld [vmem:[#allocation8 + $0xbb0] sm:$0xff]
    %v488 = vld [vmem:[#allocation8 + $0xbb8] sm:$0xff]
    %v489 = vld [vmem:[#allocation8 + $0xbc0] sm:$0xff]
    %v490 = vld [vmem:[#allocation8 + $0xbc8] sm:$0xff]
    %v491 = vld [vmem:[#allocation8 + $0xbd0] sm:$0xff]
    %v492 = vld [vmem:[#allocation8 + $0xbd8] sm:$0xff]
    %v493 = vld [vmem:[#allocation8 + $0xbe0] sm:$0xff]
    %v494 = vld [vmem:[#allocation8 + $0xbe8] sm:$0xff]
    %v495 = vld [vmem:[#allocation8 + $0xbf0] sm:$0xff]
    %v496 = vld [vmem:[#allocation8 + $0xbf8] sm:$0xff]
    %v497 = vld [vmem:[#allocation8 + $0xc00] sm:$0xff]
    %v498 = vld [vmem:[#allocation8 + $0xc08] sm:$0xff]
    %v499 = vld [vmem:[#allocation8 + $0xc10] sm:$0xff]
    %v500 = vld [vmem:[#allocation8 + $0xc18] sm:$0xff]
    %v501 = vld [vmem:[#allocation8 + $0xc20] sm:$0xff]
    %v502 = vld [vmem:[#allocation8 + $0xc28] sm:$0xff]
    %v503 = vld [vmem:[#allocation8 + $0xc30] sm:$0xff]
    %v504 = vld [vmem:[#allocation8 + $0xc38] sm:$0xff]
    %v505 = vld [vmem:[#allocation8 + $0xc40] sm:$0xff]
    %v506 = vld [vmem:[#allocation8 + $0xc48] sm:$0xff]
    %v507 = vld [vmem:[#allocation8 + $0xc50] sm:$0xff]
    %v508 = vld [vmem:[#allocation8 + $0xc58] sm:$0xff]
    %v509 = vld [vmem:[#allocation8 + $0xc60] sm:$0xff]
    %v510 = vld [vmem:[#allocation8 + $0xc68] sm:$0xff]
    %v511 = vld [vmem:[#allocation8 + $0xc70] sm:$0xff]
    %v512 = vld [vmem:[#allocation8 + $0xc78] sm:$0xff]
    %v513 = vld [vmem:[#allocation8 + $0xc80] sm:$0xff]
    %v514 = vld [vmem:[#allocation8 + $0xc88] sm:$0xff]
    %v515 = vld [vmem:[#allocation8 + $0xc90] sm:$0xff]
    %v516 = vld [vmem:[#allocation8 + $0xc98] sm:$0xff]
    %v517 = vld [vmem:[#allocation8 + $0xca0] sm:$0xff]
    %v518 = vld [vmem:[#allocation8 + $0xca8] sm:$0xff]
    %v519 = vld [vmem:[#allocation8 + $0xcb0] sm:$0xff]
    %v520 = vld [vmem:[#allocation8 + $0xcb8] sm:$0xff]
    %v521 = vld [vmem:[#allocation8 + $0xcc0] sm:$0xff]
    %v522 = vld [vmem:[#allocation8 + $0xcc8] sm:$0xff]
    %v523 = vld [vmem:[#allocation8 + $0xcd0] sm:$0xff]
    %v524 = vld [vmem:[#allocation8 + $0xcd8] sm:$0xff]
    %v525 = vld [vmem:[#allocation8 + $0xce0] sm:$0xff]
    %v526 = vld [vmem:[#allocation8 + $0xce8] sm:$0xff]
    %v527 = vld [vmem:[#allocation8 + $0xcf0] sm:$0xff]
    %v528 = vld [vmem:[#allocation8 + $0xcf8] sm:$0xff]
    %v529 = vld [vmem:[#allocation8 + $0xd00] sm:$0xff]
    %v530 = vld [vmem:[#allocation8 + $0xd08] sm:$0xff]
    %v531 = vld [vmem:[#allocation8 + $0xd10] sm:$0xff]
    %v532 = vld [vmem:[#allocation8 + $0xd18] sm:$0xff]
    %v533 = vld [vmem:[#allocation8 + $0xd20] sm:$0xff]
    %v534 = vld [vmem:[#allocation8 + $0xd28] sm:$0xff]
    %v535 = vld [vmem:[#allocation8 + $0xd30] sm:$0xff]
    %v536 = vld [vmem:[#allocation8 + $0xd38] sm:$0xff]
    %v537 = vld [vmem:[#allocation8 + $0xd40] sm:$0xff]
    %v538 = vld [vmem:[#allocation8 + $0xd48] sm:$0xff]
    %v539 = vld [vmem:[#allocation8 + $0xd50] sm:$0xff]
    %v540 = vld [vmem:[#allocation8 + $0xd58] sm:$0xff]
    %v541 = vld [vmem:[#allocation8 + $0xd60] sm:$0xff]
    %v542 = vld [vmem:[#allocation8 + $0xd68] sm:$0xff]
    %v543 = vld [vmem:[#allocation8 + $0xd70] sm:$0xff]
    %v544 = vld [vmem:[#allocation8 + $0xd78] sm:$0xff]
    %v545 = vld [vmem:[#allocation8 + $0xd80] sm:$0xff]
    %v546 = vld [vmem:[#allocation8 + $0xd88] sm:$0xff]
    %v547 = vld [vmem:[#allocation8 + $0xd90] sm:$0xff]
    %v548 = vld [vmem:[#allocation8 + $0xd98] sm:$0xff]
    %v549 = vld [vmem:[#allocation8 + $0xda0] sm:$0xff]
    %v550 = vld [vmem:[#allocation8 + $0xda8] sm:$0xff]
    %v551 = vld [vmem:[#allocation8 + $0xdb0] sm:$0xff]
    %v552 = vld [vmem:[#allocation8 + $0xdb8] sm:$0xff]
    %v553 = vld [vmem:[#allocation8 + $0xdc0] sm:$0xff]
    %v554 = vld [vmem:[#allocation8 + $0xdc8] sm:$0xff]
    %v555 = vld [vmem:[#allocation8 + $0xdd0] sm:$0xff]
    %v556 = vld [vmem:[#allocation8 + $0xdd8] sm:$0xff]
    %v557 = vld [vmem:[#allocation8 + $0xde0] sm:$0xff]
    %v558 = vld [vmem:[#allocation8 + $0xde8] sm:$0xff]
    %v559 = vld [vmem:[#allocation8 + $0xdf0] sm:$0xff]
    %v560 = vld [vmem:[#allocation8 + $0xdf8] sm:$0xff]
    %v561 = vld [vmem:[#allocation8 + $0xe00] sm:$0xff]
    %v562 = vld [vmem:[#allocation8 + $0xe08] sm:$0xff]
    %v563 = vld [vmem:[#allocation8 + $0xe10] sm:$0xff]
    %v564 = vld [vmem:[#allocation8 + $0xe18] sm:$0xff]
    %v565 = vld [vmem:[#allocation8 + $0xe20] sm:$0xff]
    %v566 = vld [vmem:[#allocation8 + $0xe28] sm:$0xff]
    %v567 = vld [vmem:[#allocation8 + $0xe30] sm:$0xff]
    %v568 = vld [vmem:[#allocation8 + $0xe38] sm:$0xff]
    %v569 = vld [vmem:[#allocation8 + $0xe40] sm:$0xff]
    %v570 = vld [vmem:[#allocation8 + $0xe48] sm:$0xff]
    %v571 = vld [vmem:[#allocation8 + $0xe50] sm:$0xff]
    %v572 = vld [vmem:[#allocation8 + $0xe58] sm:$0xff]
    %v573 = vld [vmem:[#allocation8 + $0xe60] sm:$0xff]
    %v574 = vld [vmem:[#allocation8 + $0xe68] sm:$0xff]
    %v575 = vld [vmem:[#allocation8 + $0xe70] sm:$0xff]
    %v576 = vld [vmem:[#allocation8 + $0xe78] sm:$0xff]
    %v577 = vld [vmem:[#allocation8 + $0xe80] sm:$0xff]
    %v578 = vld [vmem:[#allocation8 + $0xe88] sm:$0xff]
    %v579 = vld [vmem:[#allocation8 + $0xe90] sm:$0xff]
    %v580 = vld [vmem:[#allocation8 + $0xe98] sm:$0xff]
    %v581 = vld [vmem:[#allocation8 + $0xea0] sm:$0xff]
    %v582 = vld [vmem:[#allocation8 + $0xea8] sm:$0xff]
    %v583 = vld [vmem:[#allocation8 + $0xeb0] sm:$0xff]
    %v584 = vld [vmem:[#allocation8 + $0xeb8] sm:$0xff]
    %v585 = vld [vmem:[#allocation8 + $0xec0] sm:$0xff]
    %v586 = vld [vmem:[#allocation8 + $0xec8] sm:$0xff]
    %v587 = vld [vmem:[#allocation8 + $0xed0] sm:$0xff]
    %v588 = vld [vmem:[#allocation8 + $0xed8] sm:$0xff]
    %v589 = vld [vmem:[#allocation8 + $0xee0] sm:$0xff]
    %v590 = vld [vmem:[#allocation8 + $0xee8] sm:$0xff]
    %v591 = vld [vmem:[#allocation8 + $0xef0] sm:$0xff]
    %v592 = vld [vmem:[#allocation8 + $0xef8] sm:$0xff]
    %v593 = vld [vmem:[#allocation8 + $0xf00] sm:$0xff]
    %v594 = vld [vmem:[#allocation8 + $0xf08] sm:$0xff]
    %v595 = vld [vmem:[#allocation8 + $0xf10] sm:$0xff]
    %v596 = vld [vmem:[#allocation8 + $0xf18] sm:$0xff]
    %v597 = vld [vmem:[#allocation8 + $0xf20] sm:$0xff]
    %v598 = vld [vmem:[#allocation8 + $0xf28] sm:$0xff]
    %v599 = vld [vmem:[#allocation8 + $0xf30] sm:$0xff]
    %v600 = vld [vmem:[#allocation8 + $0xf38] sm:$0xff]
    %v601 = vld [vmem:[#allocation8 + $0xf40] sm:$0xff]
    %v602 = vld [vmem:[#allocation8 + $0xf48] sm:$0xff]
    %v603 = vld [vmem:[#allocation8 + $0xf50] sm:$0xff]
    %v604 = vld [vmem:[#allocation8 + $0xf58] sm:$0xff]
    %v605 = vld [vmem:[#allocation8 + $0xf60] sm:$0xff]
    %v606 = vld [vmem:[#allocation8 + $0xf68] sm:$0xff]
    %v607 = vld [vmem:[#allocation8 + $0xf70] sm:$0xff]
    %v608 = vld [vmem:[#allocation8 + $0xf78] sm:$0xff]
    %v609 = vld [vmem:[#allocation8 + $0xf80] sm:$0xff]
    %v610 = vld [vmem:[#allocation8 + $0xf88] sm:$0xff]
    %v611 = vld [vmem:[#allocation8 + $0xf90] sm:$0xff]
    %v612 = vld [vmem:[#allocation8 + $0xf98] sm:$0xff]
    %v613 = vld [vmem:[#allocation8 + $0xfa0] sm:$0xff]
    %v614 = vld [vmem:[#allocation8 + $0xfa8] sm:$0xff]
    %v615 = vld [vmem:[#allocation8 + $0xfb0] sm:$0xff]
    %v616 = vld [vmem:[#allocation8 + $0xfb8] sm:$0xff]
    %v617 = vld [vmem:[#allocation8 + $0xfc0] sm:$0xff]
    %v618 = vld [vmem:[#allocation8 + $0xfc8] sm:$0xff]
    %v619 = vld [vmem:[#allocation8 + $0xfd0] sm:$0xff]
    %v620 = vld [vmem:[#allocation8 + $0xfd8] sm:$0xff]
    %v621 = vld [vmem:[#allocation8 + $0xfe0] sm:$0xff]
    %v622 = vld [vmem:[#allocation8 + $0xfe8] sm:$0xff]
    %v623 = vld [vmem:[#allocation8 + $0xff0] sm:$0xff]
    %v624 = vld [vmem:[#allocation8 + $0xff8] sm:$0xff]
    %v625 = vld [vmem:[#allocation8 + $0x1000] sm:$0xff]
    %v626 = vld [vmem:[#allocation8 + $0x1008] sm:$0xff]
    %v627 = vld [vmem:[#allocation8 + $0x1010] sm:$0xff]
    %v628 = vld [vmem:[#allocation8 + $0x1018] sm:$0xff]
    %v629 = vld [vmem:[#allocation8 + $0x1020] sm:$0xff]
    %v630 = vld [vmem:[#allocation8 + $0x1028] sm:$0xff]
    %v631 = vld [vmem:[#allocation8 + $0x1030] sm:$0xff]
    %v632 = vld [vmem:[#allocation8 + $0x1038] sm:$0xff]
    %v633 = vld [vmem:[#allocation8 + $0x1040] sm:$0xff]
    %v634 = vld [vmem:[#allocation8 + $0x1048] sm:$0xff]
    %v635 = vld [vmem:[#allocation8 + $0x1050] sm:$0xff]
    %v636 = vld [vmem:[#allocation8 + $0x1058] sm:$0xff]
    %v637 = vld [vmem:[#allocation8 + $0x1060] sm:$0xff]
    %v638 = vld [vmem:[#allocation8 + $0x1068] sm:$0xff]
    %v639 = vld [vmem:[#allocation8 + $0x1070] sm:$0xff]
    %v640 = vld [vmem:[#allocation8 + $0x1078] sm:$0xff]
    %v641 = vld [vmem:[#allocation8 + $0x1080] sm:$0xff]
    %v642 = vld [vmem:[#allocation8 + $0x1088] sm:$0xff]
    %v643 = vld [vmem:[#allocation8 + $0x1090] sm:$0xff]
    %v644 = vld [vmem:[#allocation8 + $0x1098] sm:$0xff]
    %v645 = vld [vmem:[#allocation8 + $0x10a0] sm:$0xff]
    %v646 = vld [vmem:[#allocation8 + $0x10a8] sm:$0xff]
    %v647 = vld [vmem:[#allocation8 + $0x10b0] sm:$0xff]
    %v648 = vld [vmem:[#allocation8 + $0x10b8] sm:$0xff]
    %v649 = vld [vmem:[#allocation8 + $0x10c0] sm:$0xff]
    %v650 = vld [vmem:[#allocation8 + $0x10c8] sm:$0xff]
    %v651 = vld [vmem:[#allocation8 + $0x10d0] sm:$0xff]
    %v652 = vld [vmem:[#allocation8 + $0x10d8] sm:$0xff]
    %v653 = vld [vmem:[#allocation8 + $0x10e0] sm:$0xff]
    %v654 = vld [vmem:[#allocation8 + $0x10e8] sm:$0xff]
    %v655 = vld [vmem:[#allocation8 + $0x10f0] sm:$0xff]
    %v656 = vld [vmem:[#allocation8 + $0x10f8] sm:$0xff]
    %v657 = vld [vmem:[#allocation8 + $0x1100] sm:$0xff]
    %v658 = vld [vmem:[#allocation8 + $0x1108] sm:$0xff]
    %v659 = vld [vmem:[#allocation8 + $0x1110] sm:$0xff]
    %v660 = vld [vmem:[#allocation8 + $0x1118] sm:$0xff]
    %v661 = vld [vmem:[#allocation8 + $0x1120] sm:$0xff]
    %v662 = vld [vmem:[#allocation8 + $0x1128] sm:$0xff]
    %v663 = vld [vmem:[#allocation8 + $0x1130] sm:$0xff]
    %v664 = vld [vmem:[#allocation8 + $0x1138] sm:$0xff]
    %v665 = vld [vmem:[#allocation8 + $0x1140] sm:$0xff]
    %v666 = vld [vmem:[#allocation8 + $0x1148] sm:$0xff]
    %v667 = vld [vmem:[#allocation8 + $0x1150] sm:$0xff]
    %v668 = vld [vmem:[#allocation8 + $0x1158] sm:$0xff]
    %v669 = vld [vmem:[#allocation8 + $0x1160] sm:$0xff]
    %v670 = vld [vmem:[#allocation8 + $0x1168] sm:$0xff]
    %v671 = vld [vmem:[#allocation8 + $0x1170] sm:$0xff]
    %v672 = vld [vmem:[#allocation8 + $0x1178] sm:$0xff]
    %v673 = vld [vmem:[#allocation8 + $0x1180] sm:$0xff]
    %v674 = vld [vmem:[#allocation8 + $0x1188] sm:$0xff]
    %v675 = vld [vmem:[#allocation8 + $0x1190] sm:$0xff]
    %v676 = vld [vmem:[#allocation8 + $0x1198] sm:$0xff]
    %v677 = vld [vmem:[#allocation8 + $0x11a0] sm:$0xff]
    %v678 = vld [vmem:[#allocation8 + $0x11a8] sm:$0xff]
    %v679 = vld [vmem:[#allocation8 + $0x11b0] sm:$0xff]
    %v680 = vld [vmem:[#allocation8 + $0x11b8] sm:$0xff]
    %v681 = vld [vmem:[#allocation8 + $0x11c0] sm:$0xff]
    %v682 = vld [vmem:[#allocation8 + $0x11c8] sm:$0xff]
    %v683 = vld [vmem:[#allocation8 + $0x11d0] sm:$0xff]
    %v684 = vld [vmem:[#allocation8 + $0x11d8] sm:$0xff]
    %v685 = vld [vmem:[#allocation8 + $0x11e0] sm:$0xff]
    %v686 = vld [vmem:[#allocation8 + $0x11e8] sm:$0xff]
    %v687 = vld [vmem:[#allocation8 + $0x11f0] sm:$0xff]
    %v688 = vld [vmem:[#allocation8 + $0x11f8] sm:$0xff]
    %v689 = vld [vmem:[#allocation10] sm:$0x3f]
    %v691 = vlaneseq
    %v692 = vshrl.u32 %v691, 7
    %v693 = vsub.s32 0, %v692
    %v694 = vrot.slane %v689, %v693
    %v695 = vlaneseq
    %v696 = vshrl.u32 %v695, 7
    %v697 = vsub.s32 1, %v696
    %v698 = vrot.slane %v689, %v697
    %v699 = vlaneseq
    %v700 = vshrl.u32 %v699, 7
    %v701 = vsub.s32 2, %v700
    %v702 = vrot.slane %v689, %v701
    %v703 = vlaneseq
    %v704 = vshrl.u32 %v703, 7
    %v705 = vsub.s32 3, %v704
    %v706 = vrot.slane %v689, %v705
    %v707 = vlaneseq
    %v708 = vshrl.u32 %v707, 7
    %v709 = vsub.s32 4, %v708
    %v710 = vrot.slane %v689, %v709
    %v711 = vlaneseq
    %v712 = vshrl.u32 %v711, 7
    %v713 = vsub.s32 5, %v712
    %v714 = vrot.slane %v689, %v713
    %721 = vmatprep.subr.mxu0 %v114
    %722 = vmatpush1.msra.mxu0 %v113
    %723 = vmatprep.subr.mxu0 %v120
    %724 = vmatpush1.msra.mxu0 %v119
    %725 = vmatprep.subr.mxu0 %v126
    %726 = vmatpush1.msra.mxu0 %v125
    %727 = vmatprep.subr.mxu0 %v132
    %728 = vmatpush1.msra.mxu0 %v131
    %729 = vmatprep.subr.mxu0 %v138
    %730 = vmatpush1.msra.mxu0 %v137
    %731 = vmatprep.subr.mxu0 %v144
    %732 = vmatpush1.msra.mxu0 %v143
    %733 = vmatprep.subr.mxu0 %v150
    %734 = vmatpush1.msra.mxu0 %v149
    %735 = vmatprep.subr.mxu0 %v156
    %736 = vmatpush1.msra.mxu0 %v155
    %737 = vmatprep.subr.mxu0 %v162
    %738 = vmatpush1.msra.mxu0 %v161
    %739 = vmatprep.subr.mxu0 %v168
    %740 = vmatpush1.msra.mxu0 %v167
    %741 = vmatprep.subr.mxu0 %v174
    %742 = vmatpush1.msra.mxu0 %v173
    %743 = vmatprep.subr.mxu0 %v180
    %744 = vmatpush1.msra.mxu0 %v179
    %745 = vmatprep.subr.mxu0 %v186
    %746 = vmatpush1.msra.mxu0 %v185
    %747 = vmatprep.subr.mxu0 %v192
    %748 = vmatpush1.msra.mxu0 %v191
    %749 = vmatprep.subr.mxu0 %v198
    %750 = vmatpush1.msra.mxu0 %v197
    %751 = vmatprep.subr.mxu0 %v204
    %752 = vmatpush1.msra.mxu0 %v203
    %753 = vmatprep.subr.mxu0 %v210
    %754 = vmatpush1.msra.mxu0 %v209
    %755 = vmatprep.subr.mxu0 %v216
    %756 = vmatpush1.msra.mxu0 %v215
    %757 = vmatprep.subr.mxu0 %v222
    %758 = vmatpush1.msra.mxu0 %v221
    %759 = vmatprep.subr.mxu0 %v228
    %760 = vmatpush1.msra.mxu0 %v227
    %761 = vmatprep.subr.mxu0 %v234
    %762 = vmatpush1.msra.mxu0 %v233
    %763 = vmatprep.subr.mxu0 %v240
    %764 = vmatpush1.msra.mxu0 %v239
    %765 = vmatprep.subr.mxu0 %v246
    %766 = vmatpush1.msra.mxu0 %v245
    %767 = vmatprep.subr.mxu0 %v252
    %768 = vmatpush1.msra.mxu0 %v251
    %769 = vmatprep.subr.mxu0 %v258
    %770 = vmatpush1.msra.mxu0 %v257
    %771 = vmatprep.subr.mxu0 %v264
    %772 = vmatpush1.msra.mxu0 %v263
    %773 = vmatprep.subr.mxu0 %v270
    %774 = vmatpush1.msra.mxu0 %v269
    %775 = vmatprep.subr.mxu0 %v276
    %776 = vmatpush1.msra.mxu0 %v275
    %777 = vmatprep.subr.mxu0 %v282
    %778 = vmatpush1.msra.mxu0 %v281
    %779 = vmatprep.subr.mxu0 %v288
    %780 = vmatpush1.msra.mxu0 %v287
    %781 = vmatprep.subr.mxu0 %v294
    %782 = vmatpush1.msra.mxu0 %v293
    %783 = vmatprep.subr.mxu0 %v300
    %784 = vmatpush1.msra.mxu0 %v299
    %785 = vmatprep.mubr.f32.mxu0 %v108
    %786 = vmatmul.mubr.f32.gmra.mrb[0].mxu0 %v107
    %v787 = vpop.f32.mrb[0].mxu0
    %v788 = vadd.f32 %v694, %v787
    %v789 = vpop.f32.mrb[0].mxu0
    %v790 = vadd.f32 %v698, %v789
    %791 = vdwg.mxu0
    %792 = vmatprep.subr.mxu0 %v306
    %793 = vmatpush1.msra.mxu0 %v305
    %794 = vmatprep.subr.mxu0 %v312
    %795 = vmatpush1.msra.mxu0 %v311
    %796 = vmatprep.subr.mxu0 %v318
    %797 = vmatpush1.msra.mxu0 %v317
    %798 = vmatprep.subr.mxu0 %v324
    %799 = vmatpush1.msra.mxu0 %v323
    %800 = vmatprep.subr.mxu0 %v330
    %801 = vmatpush1.msra.mxu0 %v329
    %802 = vmatprep.subr.mxu0 %v336
    %803 = vmatpush1.msra.mxu0 %v335
    %804 = vmatprep.subr.mxu0 %v342
    %805 = vmatpush1.msra.mxu0 %v341
    %806 = vmatprep.subr.mxu0 %v348
    %807 = vmatpush1.msra.mxu0 %v347
    %808 = vmatprep.subr.mxu0 %v354
    %809 = vmatpush1.msra.mxu0 %v353
    %810 = vmatprep.subr.mxu0 %v360
    %811 = vmatpush1.msra.mxu0 %v359
    %812 = vmatprep.subr.mxu0 %v366
    %813 = vmatpush1.msra.mxu0 %v365
    %814 = vmatprep.subr.mxu0 %v372
    %815 = vmatpush1.msra.mxu0 %v371
    %816 = vmatprep.subr.mxu0 %v378
    %817 = vmatpush1.msra.mxu0 %v377
    %818 = vmatprep.subr.mxu0 %v384
    %819 = vmatpush1.msra.mxu0 %v383
    %820 = vmatprep.subr.mxu0 %v390
    %821 = vmatpush1.msra.mxu0 %v389
    %822 = vmatprep.subr.mxu0 %v396
    %823 = vmatpush1.msra.mxu0 %v395
    %824 = vmatprep.subr.mxu0 %v402
    %825 = vmatpush1.msra.mxu0 %v401
    %826 = vmatprep.subr.mxu0 %v408
    %827 = vmatpush1.msra.mxu0 %v407
    %828 = vmatprep.subr.mxu0 %v414
    %829 = vmatpush1.msra.mxu0 %v413
    %830 = vmatprep.subr.mxu0 %v420
    %831 = vmatpush1.msra.mxu0 %v419
    %832 = vmatprep.subr.mxu0 %v426
    %833 = vmatpush1.msra.mxu0 %v425
    %834 = vmatprep.subr.mxu0 %v432
    %835 = vmatpush1.msra.mxu0 %v431
    %836 = vmatprep.subr.mxu0 %v438
    %837 = vmatpush1.msra.mxu0 %v437
    %838 = vmatprep.subr.mxu0 %v444
    %839 = vmatpush1.msra.mxu0 %v443
    %840 = vmatprep.subr.mxu0 %v450
    %841 = vmatpush1.msra.mxu0 %v449
    %842 = vmatprep.subr.mxu0 %v456
    %843 = vmatpush1.msra.mxu0 %v455
    %844 = vmatprep.subr.mxu0 %v462
    %845 = vmatpush1.msra.mxu0 %v461
    %846 = vmatprep.subr.mxu0 %v468
    %847 = vmatpush1.msra.mxu0 %v467
    %848 = vmatprep.subr.mxu0 %v474
    %849 = vmatpush1.msra.mxu0 %v473
    %850 = vmatprep.subr.mxu0 %v480
    %851 = vmatpush1.msra.mxu0 %v479
    %852 = vmatprep.subr.mxu0 %v486
    %853 = vmatpush1.msra.mxu0 %v485
    %854 = vmatprep.subr.mxu0 %v492
    %855 = vmatpush1.msra.mxu0 %v491
    %856 = vmatprep.mubr.f32.mxu0 %v110
    %857 = vmatmul.mubr.f32.gmra.mrb[0].mxu0 %v109
    %v858 = vpop.f32.mrb[0].mxu0
    %v859 = vadd.f32 %v788, %v858
    %v860 = vpop.f32.mrb[0].mxu0
    %v861 = vadd.f32 %v790, %v860
    %862 = vdwg.mxu0
    %863 = vmatprep.subr.mxu0 %v498
    %864 = vmatpush1.msra.mxu0 %v497
    %865 = vmatprep.subr.mxu0 %v504
    %866 = vmatpush1.msra.mxu0 %v503
    %867 = vmatprep.subr.mxu0 %v510
    %868 = vmatpush1.msra.mxu0 %v509
    %869 = vmatprep.subr.mxu0 %v516
    %870 = vmatpush1.msra.mxu0 %v515
    %871 = vmatprep.subr.mxu0 %v522
    %872 = vmatpush1.msra.mxu0 %v521
    %873 = vmatprep.subr.mxu0 %v528
    %874 = vmatpush1.msra.mxu0 %v527
    %875 = vmatprep.subr.mxu0 %v534
    %876 = vmatpush1.msra.mxu0 %v533
    %877 = vmatprep.subr.mxu0 %v540
    %878 = vmatpush1.msra.mxu0 %v539
    %879 = vmatprep.subr.mxu0 %v546
    %880 = vmatpush1.msra.mxu0 %v545
    %881 = vmatprep.subr.mxu0 %v552
    %882 = vmatpush1.msra.mxu0 %v551
    %883 = vmatprep.subr.mxu0 %v558
    %884 = vmatpush1.msra.mxu0 %v557
    %885 = vmatprep.subr.mxu0 %v564
    %886 = vmatpush1.msra.mxu0 %v563
    %887 = vmatprep.subr.mxu0 %v570
    %888 = vmatpush1.msra.mxu0 %v569
    %889 = vmatprep.subr.mxu0 %v576
    %890 = vmatpush1.msra.mxu0 %v575
    %891 = vmatprep.subr.mxu0 %v582
    %892 = vmatpush1.msra.mxu0 %v581
    %893 = vmatprep.subr.mxu0 %v588
    %894 = vmatpush1.msra.mxu0 %v587
    %895 = vmatprep.subr.mxu0 %v594
    %896 = vmatpush1.msra.mxu0 %v593
    %897 = vmatprep.subr.mxu0 %v600
    %898 = vmatpush1.msra.mxu0 %v599
    %899 = vmatprep.subr.mxu0 %v606
    %900 = vmatpush1.msra.mxu0 %v605
    %901 = vmatprep.subr.mxu0 %v612
    %902 = vmatpush1.msra.mxu0 %v611
    %903 = vmatprep.subr.mxu0 %v618
    %904 = vmatpush1.msra.mxu0 %v617
    %905 = vmatprep.subr.mxu0 %v624
    %906 = vmatpush1.msra.mxu0 %v623
    %907 = vmatprep.subr.mxu0 %v630
    %908 = vmatpush1.msra.mxu0 %v629
    %909 = vmatprep.subr.mxu0 %v636
    %910 = vmatpush1.msra.mxu0 %v635
    %911 = vmatprep.subr.mxu0 %v642
    %912 = vmatpush1.msra.mxu0 %v641
    %913 = vmatprep.subr.mxu0 %v648
    %914 = vmatpush1.msra.mxu0 %v647
    %915 = vmatprep.subr.mxu0 %v654
    %916 = vmatpush1.msra.mxu0 %v653
    %917 = vmatprep.subr.mxu0 %v660
    %918 = vmatpush1.msra.mxu0 %v659
    %919 = vmatprep.subr.mxu0 %v666
    %920 = vmatpush1.msra.mxu0 %v665
    %921 = vmatprep.subr.mxu0 %v672
    %922 = vmatpush1.msra.mxu0 %v671
    %923 = vmatprep.subr.mxu0 %v678
    %924 = vmatpush1.msra.mxu0 %v677
    %925 = vmatprep.subr.mxu0 %v684
    %926 = vmatpush1.msra.mxu0 %v683
    %927 = vmatprep.mubr.f32.mxu0 %v112
    %928 = vmatmul.mubr.f32.gmra.mrb[0].mxu0 %v111
    %v929 = vpop.f32.mrb[0].mxu0
    %v930 = vadd.f32 %v859, %v929
    %v931 = vpop.f32.mrb[0].mxu0
    %v932 = vadd.f32 %v861, %v931
    %933 = vdwg.mxu0
    %934 = vmatprep.subr.mxu0 %v116
    %935 = vmatpush1.msra.mxu0 %v115
    %936 = vmatprep.subr.mxu0 %v122
    %937 = vmatpush1.msra.mxu0 %v121
    %938 = vmatprep.subr.mxu0 %v128
    %939 = vmatpush1.msra.mxu0 %v127
    %940 = vmatprep.subr.mxu0 %v134
    %941 = vmatpush1.msra.mxu0 %v133
    %942 = vmatprep.subr.mxu0 %v140
    %943 = vmatpush1.msra.mxu0 %v139
    %944 = vmatprep.subr.mxu0 %v146
    %945 = vmatpush1.msra.mxu0 %v145
    %946 = vmatprep.subr.mxu0 %v152
    %947 = vmatpush1.msra.mxu0 %v151
    %948 = vmatprep.subr.mxu0 %v158
    %949 = vmatpush1.msra.mxu0 %v157
    %950 = vmatprep.subr.mxu0 %v164
    %951 = vmatpush1.msra.mxu0 %v163
    %952 = vmatprep.subr.mxu0 %v170
    %953 = vmatpush1.msra.mxu0 %v169
    %954 = vmatprep.subr.mxu0 %v176
    %955 = vmatpush1.msra.mxu0 %v175
    %956 = vmatprep.subr.mxu0 %v182
    %957 = vmatpush1.msra.mxu0 %v181
    %958 = vmatprep.subr.mxu0 %v188
    %959 = vmatpush1.msra.mxu0 %v187
    %960 = vmatprep.subr.mxu0 %v194
    %961 = vmatpush1.msra.mxu0 %v193
    %962 = vmatprep.subr.mxu0 %v200
    %963 = vmatpush1.msra.mxu0 %v199
    %964 = vmatprep.subr.mxu0 %v206
    %965 = vmatpush1.msra.mxu0 %v205
    %966 = vmatprep.subr.mxu0 %v212
    %967 = vmatpush1.msra.mxu0 %v211
    %968 = vmatprep.subr.mxu0 %v218
    %969 = vmatpush1.msra.mxu0 %v217
    %970 = vmatprep.subr.mxu0 %v224
    %971 = vmatpush1.msra.mxu0 %v223
    %972 = vmatprep.subr.mxu0 %v230
    %973 = vmatpush1.msra.mxu0 %v229
    %974 = vmatprep.subr.mxu0 %v236
    %975 = vmatpush1.msra.mxu0 %v235
    %976 = vmatprep.subr.mxu0 %v242
    %977 = vmatpush1.msra.mxu0 %v241
    %978 = vmatprep.subr.mxu0 %v248
    %979 = vmatpush1.msra.mxu0 %v247
    %980 = vmatprep.subr.mxu0 %v254
    %981 = vmatpush1.msra.mxu0 %v253
    %982 = vmatprep.subr.mxu0 %v260
    %983 = vmatpush1.msra.mxu0 %v259
    %984 = vmatprep.subr.mxu0 %v266
    %985 = vmatpush1.msra.mxu0 %v265
    %986 = vmatprep.subr.mxu0 %v272
    %987 = vmatpush1.msra.mxu0 %v271
    %988 = vmatprep.subr.mxu0 %v278
    %989 = vmatpush1.msra.mxu0 %v277
    %990 = vmatprep.subr.mxu0 %v284
    %991 = vmatpush1.msra.mxu0 %v283
    %992 = vmatprep.subr.mxu0 %v290
    %993 = vmatpush1.msra.mxu0 %v289
    %994 = vmatprep.subr.mxu0 %v296
    %995 = vmatpush1.msra.mxu0 %v295
    %996 = vmatprep.subr.mxu0 %v302
    %997 = vmatpush1.msra.mxu0 %v301
    %998 = vmatprep.mubr.f32.mxu0 %v108
    %999 = vmatmul.mubr.f32.gmra.mrb[0].mxu0 %v107
    %v1000 = vpop.f32.mrb[0].mxu0
    %v1001 = vadd.f32 %v702, %v1000
    %v1002 = vpop.f32.mrb[0].mxu0
    %v1003 = vadd.f32 %v706, %v1002
    %1004 = vdwg.mxu0
    %1005 = vmatprep.subr.mxu0 %v308
    %1006 = vmatpush1.msra.mxu0 %v307
    %1007 = vmatprep.subr.mxu0 %v314
    %1008 = vmatpush1.msra.mxu0 %v313
    %1009 = vmatprep.subr.mxu0 %v320
    %1010 = vmatpush1.msra.mxu0 %v319
    %1011 = vmatprep.subr.mxu0 %v326
    %1012 = vmatpush1.msra.mxu0 %v325
    %1013 = vmatprep.subr.mxu0 %v332
    %1014 = vmatpush1.msra.mxu0 %v331
    %1015 = vmatprep.subr.mxu0 %v338
    %1016 = vmatpush1.msra.mxu0 %v337
    %1017 = vmatprep.subr.mxu0 %v344
    %1018 = vmatpush1.msra.mxu0 %v343
    %1019 = vmatprep.subr.mxu0 %v350
    %1020 = vmatpush1.msra.mxu0 %v349
    %1021 = vmatprep.subr.mxu0 %v356
    %1022 = vmatpush1.msra.mxu0 %v355
    %1023 = vmatprep.subr.mxu0 %v362
    %1024 = vmatpush1.msra.mxu0 %v361
    %1025 = vmatprep.subr.mxu0 %v368
    %1026 = vmatpush1.msra.mxu0 %v367
    %1027 = vmatprep.subr.mxu0 %v374
    %1028 = vmatpush1.msra.mxu0 %v373
    %1029 = vmatprep.subr.mxu0 %v380
    %1030 = vmatpush1.msra.mxu0 %v379
    %1031 = vmatprep.subr.mxu0 %v386
    %1032 = vmatpush1.msra.mxu0 %v385
    %1033 = vmatprep.subr.mxu0 %v392
    %1034 = vmatpush1.msra.mxu0 %v391
    %1035 = vmatprep.subr.mxu0 %v398
    %1036 = vmatpush1.msra.mxu0 %v397
    %1037 = vmatprep.subr.mxu0 %v404
    %1038 = vmatpush1.msra.mxu0 %v403
    %1039 = vmatprep.subr.mxu0 %v410
    %1040 = vmatpush1.msra.mxu0 %v409
    %1041 = vmatprep.subr.mxu0 %v416
    %1042 = vmatpush1.msra.mxu0 %v415
    %1043 = vmatprep.subr.mxu0 %v422
    %1044 = vmatpush1.msra.mxu0 %v421
    %1045 = vmatprep.subr.mxu0 %v428
    %1046 = vmatpush1.msra.mxu0 %v427
    %1047 = vmatprep.subr.mxu0 %v434
    %1048 = vmatpush1.msra.mxu0 %v433
    %1049 = vmatprep.subr.mxu0 %v440
    %1050 = vmatpush1.msra.mxu0 %v439
    %1051 = vmatprep.subr.mxu0 %v446
    %1052 = vmatpush1.msra.mxu0 %v445
    %1053 = vmatprep.subr.mxu0 %v452
    %1054 = vmatpush1.msra.mxu0 %v451
    %1055 = vmatprep.subr.mxu0 %v458
    %1056 = vmatpush1.msra.mxu0 %v457
    %1057 = vmatprep.subr.mxu0 %v464
    %1058 = vmatpush1.msra.mxu0 %v463
    %1059 = vmatprep.subr.mxu0 %v470
    %1060 = vmatpush1.msra.mxu0 %v469
    %1061 = vmatprep.subr.mxu0 %v476
    %1062 = vmatpush1.msra.mxu0 %v475
    %1063 = vmatprep.subr.mxu0 %v482
    %1064 = vmatpush1.msra.mxu0 %v481
    %1065 = vmatprep.subr.mxu0 %v488
    %1066 = vmatpush1.msra.mxu0 %v487
    %1067 = vmatprep.subr.mxu0 %v494
    %1068 = vmatpush1.msra.mxu0 %v493
    %1069 = vmatprep.mubr.f32.mxu0 %v110
    %1070 = vmatmul.mubr.f32.gmra.mrb[0].mxu0 %v109
    %v1071 = vpop.f32.mrb[0].mxu0
    %v1072 = vadd.f32 %v1001, %v1071
    %v1073 = vpop.f32.mrb[0].mxu0
    %v1074 = vadd.f32 %v1003, %v1073
    %1075 = vdwg.mxu0
    %1076 = vmatprep.subr.mxu0 %v500
    %1077 = vmatpush1.msra.mxu0 %v499
    %1078 = vmatprep.subr.mxu0 %v506
    %1079 = vmatpush1.msra.mxu0 %v505
    %1080 = vmatprep.subr.mxu0 %v512
    %1081 = vmatpush1.msra.mxu0 %v511
    %1082 = vmatprep.subr.mxu0 %v518
    %1083 = vmatpush1.msra.mxu0 %v517
    %1084 = vmatprep.subr.mxu0 %v524
    %1085 = vmatpush1.msra.mxu0 %v523
    %1086 = vmatprep.subr.mxu0 %v530
    %1087 = vmatpush1.msra.mxu0 %v529
    %1088 = vmatprep.subr.mxu0 %v536
    %1089 = vmatpush1.msra.mxu0 %v535
    %1090 = vmatprep.subr.mxu0 %v542
    %1091 = vmatpush1.msra.mxu0 %v541
    %1092 = vmatprep.subr.mxu0 %v548
    %1093 = vmatpush1.msra.mxu0 %v547
    %1094 = vmatprep.subr.mxu0 %v554
    %1095 = vmatpush1.msra.mxu0 %v553
    %1096 = vmatprep.subr.mxu0 %v560
    %1097 = vmatpush1.msra.mxu0 %v559
    %1098 = vmatprep.subr.mxu0 %v566
    %1099 = vmatpush1.msra.mxu0 %v565
    %1100 = vmatprep.subr.mxu0 %v572
    %1101 = vmatpush1.msra.mxu0 %v571
    %1102 = vmatprep.subr.mxu0 %v578
    %1103 = vmatpush1.msra.mxu0 %v577
    %1104 = vmatprep.subr.mxu0 %v584
    %1105 = vmatpush1.msra.mxu0 %v583
    %1106 = vmatprep.subr.mxu0 %v590
    %1107 = vmatpush1.msra.mxu0 %v589
    %1108 = vmatprep.subr.mxu0 %v596
    %1109 = vmatpush1.msra.mxu0 %v595
    %1110 = vmatprep.subr.mxu0 %v602
    %1111 = vmatpush1.msra.mxu0 %v601
    %1112 = vmatprep.subr.mxu0 %v608
    %1113 = vmatpush1.msra.mxu0 %v607
    %1114 = vmatprep.subr.mxu0 %v614
    %1115 = vmatpush1.msra.mxu0 %v613
    %1116 = vmatprep.subr.mxu0 %v620
    %1117 = vmatpush1.msra.mxu0 %v619
    %1118 = vmatprep.subr.mxu0 %v626
    %1119 = vmatpush1.msra.mxu0 %v625
    %1120 = vmatprep.subr.mxu0 %v632
    %1121 = vmatpush1.msra.mxu0 %v631
    %1122 = vmatprep.subr.mxu0 %v638
    %1123 = vmatpush1.msra.mxu0 %v637
    %1124 = vmatprep.subr.mxu0 %v644
    %1125 = vmatpush1.msra.mxu0 %v643
    %1126 = vmatprep.subr.mxu0 %v650
    %1127 = vmatpush1.msra.mxu0 %v649
    %1128 = vmatprep.subr.mxu0 %v656
    %1129 = vmatpush1.msra.mxu0 %v655
    %1130 = vmatprep.subr.mxu0 %v662
    %1131 = vmatpush1.msra.mxu0 %v661
    %1132 = vmatprep.subr.mxu0 %v668
    %1133 = vmatpush1.msra.mxu0 %v667
    %1134 = vmatprep.subr.mxu0 %v674
    %1135 = vmatpush1.msra.mxu0 %v673
    %1136 = vmatprep.subr.mxu0 %v680
    %1137 = vmatpush1.msra.mxu0 %v679
    %1138 = vmatprep.subr.mxu0 %v686
    %1139 = vmatpush1.msra.mxu0 %v685
    %1140 = vmatprep.mubr.f32.mxu0 %v112
    %1141 = vmatmul.mubr.f32.gmra.mrb[0].mxu0 %v111
    %v1142 = vpop.f32.mrb[0].mxu0
    %v1143 = vadd.f32 %v1072, %v1142
    %v1144 = vpop.f32.mrb[0].mxu0
    %v1145 = vadd.f32 %v1074, %v1144
    %1146 = vdwg.mxu0
    %1147 = vmatprep.subr.mxu0 %v118
    %1148 = vmatpush1.msra.mxu0 %v117
    %1149 = vmatprep.subr.mxu0 %v124
    %1150 = vmatpush1.msra.mxu0 %v123
    %1151 = vmatprep.subr.mxu0 %v130
    %1152 = vmatpush1.msra.mxu0 %v129
    %1153 = vmatprep.subr.mxu0 %v136
    %1154 = vmatpush1.msra.mxu0 %v135
    %1155 = vmatprep.subr.mxu0 %v142
    %1156 = vmatpush1.msra.mxu0 %v141
    %1157 = vmatprep.subr.mxu0 %v148
    %1158 = vmatpush1.msra.mxu0 %v147
    %1159 = vmatprep.subr.mxu0 %v154
    %1160 = vmatpush1.msra.mxu0 %v153
    %1161 = vmatprep.subr.mxu0 %v160
    %1162 = vmatpush1.msra.mxu0 %v159
    %1163 = vmatprep.subr.mxu0 %v166
    %1164 = vmatpush1.msra.mxu0 %v165
    %1165 = vmatprep.subr.mxu0 %v172
    %1166 = vmatpush1.msra.mxu0 %v171
    %1167 = vmatprep.subr.mxu0 %v178
    %1168 = vmatpush1.msra.mxu0 %v177
    %1169 = vmatprep.subr.mxu0 %v184
    %1170 = vmatpush1.msra.mxu0 %v183
    %1171 = vmatprep.subr.mxu0 %v190
    %1172 = vmatpush1.msra.mxu0 %v189
    %1173 = vmatprep.subr.mxu0 %v196
    %1174 = vmatpush1.msra.mxu0 %v195
    %1175 = vmatprep.subr.mxu0 %v202
    %1176 = vmatpush1.msra.mxu0 %v201
    %1177 = vmatprep.subr.mxu0 %v208
    %1178 = vmatpush1.msra.mxu0 %v207
    %1179 = vmatprep.subr.mxu0 %v214
    %1180 = vmatpush1.msra.mxu0 %v213
    %1181 = vmatprep.subr.mxu0 %v220
    %1182 = vmatpush1.msra.mxu0 %v219
    %1183 = vmatprep.subr.mxu0 %v226
    %1184 = vmatpush1.msra.mxu0 %v225
    %1185 = vmatprep.subr.mxu0 %v232
    %1186 = vmatpush1.msra.mxu0 %v231
    %1187 = vmatprep.subr.mxu0 %v238
    %1188 = vmatpush1.msra.mxu0 %v237
    %1189 = vmatprep.subr.mxu0 %v244
    %1190 = vmatpush1.msra.mxu0 %v243
    %1191 = vmatprep.subr.mxu0 %v250
    %1192 = vmatpush1.msra.mxu0 %v249
    %1193 = vmatprep.subr.mxu0 %v256
    %1194 = vmatpush1.msra.mxu0 %v255
    %1195 = vmatprep.subr.mxu0 %v262
    %1196 = vmatpush1.msra.mxu0 %v261
    %1197 = vmatprep.subr.mxu0 %v268
    %1198 = vmatpush1.msra.mxu0 %v267
    %1199 = vmatprep.subr.mxu0 %v274
    %1200 = vmatpush1.msra.mxu0 %v273
    %1201 = vmatprep.subr.mxu0 %v280
    %1202 = vmatpush1.msra.mxu0 %v279
    %1203 = vmatprep.subr.mxu0 %v286
    %1204 = vmatpush1.msra.mxu0 %v285
    %1205 = vmatprep.subr.mxu0 %v292
    %1206 = vmatpush1.msra.mxu0 %v291
    %1207 = vmatprep.subr.mxu0 %v298
    %1208 = vmatpush1.msra.mxu0 %v297
    %1209 = vmatprep.subr.mxu0 %v304
    %1210 = vmatpush1.msra.mxu0 %v303
    %1211 = vmatprep.mubr.f32.mxu0 %v108
    %1212 = vmatmul.mubr.f32.gmra.mrb[0].mxu0 %v107
    %v1213 = vpop.f32.mrb[0].mxu0
    %v1214 = vadd.f32 %v710, %v1213
    %v1215 = vpop.f32.mrb[0].mxu0
    %v1216 = vadd.f32 %v714, %v1215
    %1217 = vdwg.mxu0
    %1218 = vmatprep.subr.mxu0 %v310
    %1219 = vmatpush1.msra.mxu0 %v309
    %1220 = vmatprep.subr.mxu0 %v316
    %1221 = vmatpush1.msra.mxu0 %v315
    %1222 = vmatprep.subr.mxu0 %v322
    %1223 = vmatpush1.msra.mxu0 %v321
    %1224 = vmatprep.subr.mxu0 %v328
    %1225 = vmatpush1.msra.mxu0 %v327
    %1226 = vmatprep.subr.mxu0 %v334
    %1227 = vmatpush1.msra.mxu0 %v333
    %1228 = vmatprep.subr.mxu0 %v340
    %1229 = vmatpush1.msra.mxu0 %v339
    %1230 = vmatprep.subr.mxu0 %v346
    %1231 = vmatpush1.msra.mxu0 %v345
    %1232 = vmatprep.subr.mxu0 %v352
    %1233 = vmatpush1.msra.mxu0 %v351
    %1234 = vmatprep.subr.mxu0 %v358
    %1235 = vmatpush1.msra.mxu0 %v357
    %1236 = vmatprep.subr.mxu0 %v364
    %1237 = vmatpush1.msra.mxu0 %v363
    %1238 = vmatprep.subr.mxu0 %v370
    %1239 = vmatpush1.msra.mxu0 %v369
    %1240 = vmatprep.subr.mxu0 %v376
    %1241 = vmatpush1.msra.mxu0 %v375
    %1242 = vmatprep.subr.mxu0 %v382
    %1243 = vmatpush1.msra.mxu0 %v381
    %1244 = vmatprep.subr.mxu0 %v388
    %1245 = vmatpush1.msra.mxu0 %v387
    %1246 = vmatprep.subr.mxu0 %v394
    %1247 = vmatpush1.msra.mxu0 %v393
    %1248 = vmatprep.subr.mxu0 %v400
    %1249 = vmatpush1.msra.mxu0 %v399
    %1250 = vmatprep.subr.mxu0 %v406
    %1251 = vmatpush1.msra.mxu0 %v405
    %1252 = vmatprep.subr.mxu0 %v412
    %1253 = vmatpush1.msra.mxu0 %v411
    %1254 = vmatprep.subr.mxu0 %v418
    %1255 = vmatpush1.msra.mxu0 %v417
    %1256 = vmatprep.subr.mxu0 %v424
    %1257 = vmatpush1.msra.mxu0 %v423
    %1258 = vmatprep.subr.mxu0 %v430
    %1259 = vmatpush1.msra.mxu0 %v429
    %1260 = vmatprep.subr.mxu0 %v436
    %1261 = vmatpush1.msra.mxu0 %v435
    %1262 = vmatprep.subr.mxu0 %v442
    %1263 = vmatpush1.msra.mxu0 %v441
    %1264 = vmatprep.subr.mxu0 %v448
    %1265 = vmatpush1.msra.mxu0 %v447
    %1266 = vmatprep.subr.mxu0 %v454
    %1267 = vmatpush1.msra.mxu0 %v453
    %1268 = vmatprep.subr.mxu0 %v460
    %1269 = vmatpush1.msra.mxu0 %v459
    %1270 = vmatprep.subr.mxu0 %v466
    %1271 = vmatpush1.msra.mxu0 %v465
    %1272 = vmatprep.subr.mxu0 %v472
    %1273 = vmatpush1.msra.mxu0 %v471
    %1274 = vmatprep.subr.mxu0 %v478
    %1275 = vmatpush1.msra.mxu0 %v477
    %1276 = vmatprep.subr.mxu0 %v484
    %1277 = vmatpush1.msra.mxu0 %v483
    %1278 = vmatprep.subr.mxu0 %v490
    %1279 = vmatpush1.msra.mxu0 %v489
    %1280 = vmatprep.subr.mxu0 %v496
    %1281 = vmatpush1.msra.mxu0 %v495
    %1282 = vmatprep.mubr.f32.mxu0 %v110
    %1283 = vmatmul.mubr.f32.gmra.mrb[0].mxu0 %v109
    %v1284 = vpop.f32.mrb[0].mxu0
    %v1285 = vadd.f32 %v1214, %v1284
    %v1286 = vpop.f32.mrb[0].mxu0
    %v1287 = vadd.f32 %v1216, %v1286
    %1288 = vdwg.mxu0
    %1289 = vmatprep.subr.mxu0 %v502
    %1290 = vmatpush1.msra.mxu0 %v501
    %1291 = vmatprep.subr.mxu0 %v508
    %1292 = vmatpush1.msra.mxu0 %v507
    %1293 = vmatprep.subr.mxu0 %v514
    %1294 = vmatpush1.msra.mxu0 %v513
    %1295 = vmatprep.subr.mxu0 %v520
    %1296 = vmatpush1.msra.mxu0 %v519
    %1297 = vmatprep.subr.mxu0 %v526
    %1298 = vmatpush1.msra.mxu0 %v525
    %1299 = vmatprep.subr.mxu0 %v532
    %1300 = vmatpush1.msra.mxu0 %v531
    %1301 = vmatprep.subr.mxu0 %v538
    %1302 = vmatpush1.msra.mxu0 %v537
    %1303 = vmatprep.subr.mxu0 %v544
    %1304 = vmatpush1.msra.mxu0 %v543
    %1305 = vmatprep.subr.mxu0 %v550
    %1306 = vmatpush1.msra.mxu0 %v549
    %1307 = vmatprep.subr.mxu0 %v556
    %1308 = vmatpush1.msra.mxu0 %v555
    %1309 = vmatprep.subr.mxu0 %v562
    %1310 = vmatpush1.msra.mxu0 %v561
    %1311 = vmatprep.subr.mxu0 %v568
    %1312 = vmatpush1.msra.mxu0 %v567
    %1313 = vmatprep.subr.mxu0 %v574
    %1314 = vmatpush1.msra.mxu0 %v573
    %1315 = vmatprep.subr.mxu0 %v580
    %1316 = vmatpush1.msra.mxu0 %v579
    %1317 = vmatprep.subr.mxu0 %v586
    %1318 = vmatpush1.msra.mxu0 %v585
    %1319 = vmatprep.subr.mxu0 %v592
    %1320 = vmatpush1.msra.mxu0 %v591
    %1321 = vmatprep.subr.mxu0 %v598
    %1322 = vmatpush1.msra.mxu0 %v597
    %1323 = vmatprep.subr.mxu0 %v604
    %1324 = vmatpush1.msra.mxu0 %v603
    %1325 = vmatprep.subr.mxu0 %v610
    %1326 = vmatpush1.msra.mxu0 %v609
    %1327 = vmatprep.subr.mxu0 %v616
    %1328 = vmatpush1.msra.mxu0 %v615
    %1329 = vmatprep.subr.mxu0 %v622
    %1330 = vmatpush1.msra.mxu0 %v621
    %1331 = vmatprep.subr.mxu0 %v628
    %1332 = vmatpush1.msra.mxu0 %v627
    %1333 = vmatprep.subr.mxu0 %v634
    %1334 = vmatpush1.msra.mxu0 %v633
    %1335 = vmatprep.subr.mxu0 %v640
    %1336 = vmatpush1.msra.mxu0 %v639
    %1337 = vmatprep.subr.mxu0 %v646
    %1338 = vmatpush1.msra.mxu0 %v645
    %1339 = vmatprep.subr.mxu0 %v652
    %1340 = vmatpush1.msra.mxu0 %v651
    %1341 = vmatprep.subr.mxu0 %v658
    %1342 = vmatpush1.msra.mxu0 %v657
    %1343 = vmatprep.subr.mxu0 %v664
    %1344 = vmatpush1.msra.mxu0 %v663
    %1345 = vmatprep.subr.mxu0 %v670
    %1346 = vmatpush1.msra.mxu0 %v669
    %1347 = vmatprep.subr.mxu0 %v676
    %1348 = vmatpush1.msra.mxu0 %v675
    %1349 = vmatprep.subr.mxu0 %v682
    %1350 = vmatpush1.msra.mxu0 %v681
    %1351 = vmatprep.subr.mxu0 %v688
    %1352 = vmatpush1.msra.mxu0 %v687
    %1353 = vmatprep.mubr.f32.mxu0 %v112
    %1354 = vmatmul.mubr.f32.gmra.mrb[0].mxu0 %v111
    %v1355 = vpop.f32.mrb[0].mxu0
    %v1356 = vadd.f32 %v1285, %v1355
    %v1357 = vpop.f32.mrb[0].mxu0
    %v1358 = vadd.f32 %v1287, %v1357
    %1359 = vdwg.mxu0
    %v1360 = vmax.f32 %v930, 0.0
    %v1361 = vmax.f32 %v932, 0.0
    %v1362 = vmax.f32 %v1143, 0.0
    %v1363 = vmax.f32 %v1145, 0.0
    %v1364 = vmax.f32 %v1356, 0.0
    %v1365 = vmax.f32 %v1358, 0.0
    %v1366 = vld [vmem:[%s5] sm:$0xff]
    %v1367 = vld [vmem:[%s5 + $0x8] sm:$0xff]
    %v1368 = vld [vmem:[%s5 + $0x10] sm:$0xff]
    %v1369 = vld [vmem:[%s5 + $0x18] sm:$0xff]
    %v1370 = vld [vmem:[%s5 + $0x20] sm:$0xff]
    %v1371 = vld [vmem:[%s5 + $0x28] sm:$0xff]
    %v1372 = vld [vmem:[%s5 + $0x30] sm:$0xff]
    %v1373 = vld [vmem:[%s5 + $0x38] sm:$0xff]
    %v1374 = vld [vmem:[%s5 + $0x40] sm:$0xff]
    %v1375 = vld [vmem:[%s5 + $0x48] sm:$0xff]
    %v1376 = vld [vmem:[%s5 + $0x50] sm:$0xff]
    %v1377 = vld [vmem:[%s5 + $0x58] sm:$0xff]
    %v1378 = vld [vmem:[%s5 + $0x60] sm:$0xff]
    %v1379 = vld [vmem:[%s5 + $0x68] sm:$0xff]
    %v1380 = vld [vmem:[%s5 + $0x70] sm:$0xff]
    %v1381 = vld [vmem:[%s5 + $0x78] sm:$0xff]
    %v1382 = vld [vmem:[%s5 + $0x80] sm:$0xff]
    %v1383 = vld [vmem:[%s5 + $0x88] sm:$0xff]
    %v1384 = vld [vmem:[%s5 + $0x90] sm:$0xff]
    %v1385 = vld [vmem:[%s5 + $0x98] sm:$0xff]
    %v1386 = vld [vmem:[%s5 + $0xa0] sm:$0xff]
    %v1387 = vld [vmem:[%s5 + $0xa8] sm:$0xff]
    %v1388 = vld [vmem:[%s5 + $0xb0] sm:$0xff]
    %v1389 = vld [vmem:[%s5 + $0xb8] sm:$0xff]
    %v1390 = vld [vmem:[%s5 + $0xc0] sm:$0xff]
    %v1391 = vld [vmem:[%s5 + $0xc8] sm:$0xff]
    %v1392 = vld [vmem:[%s5 + $0xd0] sm:$0xff]
    %v1393 = vld [vmem:[%s5 + $0xd8] sm:$0xff]
    %v1394 = vld [vmem:[%s5 + $0xe0] sm:$0xff]
    %v1395 = vld [vmem:[%s5 + $0xe8] sm:$0xff]
    %v1396 = vld [vmem:[%s5 + $0xf0] sm:$0xff]
    %v1397 = vld [vmem:[%s5 + $0xf8] sm:$0xff]
    %v1398 = vld [vmem:[%s5 + $0x100] sm:$0xff]
    %v1399 = vld [vmem:[%s5 + $0x108] sm:$0xff]
    %v1400 = vld [vmem:[%s5 + $0x110] sm:$0xff]
    %v1401 = vld [vmem:[%s5 + $0x118] sm:$0xff]
    %v1402 = vld [vmem:[%s5 + $0x120] sm:$0xff]
    %v1403 = vld [vmem:[%s5 + $0x128] sm:$0xff]
    %v1404 = vld [vmem:[%s5 + $0x130] sm:$0xff]
    %v1405 = vld [vmem:[%s5 + $0x138] sm:$0xff]
    %v1406 = vld [vmem:[%s5 + $0x140] sm:$0xff]
    %v1407 = vld [vmem:[%s5 + $0x148] sm:$0xff]
    %v1408 = vld [vmem:[%s5 + $0x150] sm:$0xff]
    %v1409 = vld [vmem:[%s5 + $0x158] sm:$0xff]
    %v1410 = vld [vmem:[%s5 + $0x160] sm:$0xff]
    %v1411 = vld [vmem:[%s5 + $0x168] sm:$0xff]
    %v1412 = vld [vmem:[%s5 + $0x170] sm:$0xff]
    %v1413 = vld [vmem:[%s5 + $0x178] sm:$0xff]
    %v1414 = vld [vmem:[%s5 + $0x180] sm:$0xff]
    %v1415 = vld [vmem:[%s5 + $0x188] sm:$0xff]
    %v1416 = vld [vmem:[%s5 + $0x190] sm:$0xff]
    %v1417 = vld [vmem:[%s5 + $0x198] sm:$0xff]
    %v1418 = vld [vmem:[%s5 + $0x1a0] sm:$0xff]
    %v1419 = vld [vmem:[%s5 + $0x1a8] sm:$0xff]
    %v1420 = vld [vmem:[%s5 + $0x1b0] sm:$0xff]
    %v1421 = vld [vmem:[%s5 + $0x1b8] sm:$0xff]
    %v1422 = vld [vmem:[%s5 + $0x1c0] sm:$0xff]
    %v1423 = vld [vmem:[%s5 + $0x1c8] sm:$0xff]
    %v1424 = vld [vmem:[%s5 + $0x1d0] sm:$0xff]
    %v1425 = vld [vmem:[%s5 + $0x1d8] sm:$0xff]
    %v1426 = vld [vmem:[%s5 + $0x1e0] sm:$0xff]
    %v1427 = vld [vmem:[%s5 + $0x1e8] sm:$0xff]
    %v1428 = vld [vmem:[%s5 + $0x1f0] sm:$0xff]
    %v1429 = vld [vmem:[%s5 + $0x1f8] sm:$0xff]
    %v1430 = vld [vmem:[%s5 + $0x200] sm:$0xff]
    %v1431 = vld [vmem:[%s5 + $0x208] sm:$0xff]
    %v1432 = vld [vmem:[%s5 + $0x210] sm:$0xff]
    %v1433 = vld [vmem:[%s5 + $0x218] sm:$0xff]
    %v1434 = vld [vmem:[%s5 + $0x220] sm:$0xff]
    %v1435 = vld [vmem:[%s5 + $0x228] sm:$0xff]
    %v1436 = vld [vmem:[%s5 + $0x230] sm:$0xff]
    %v1437 = vld [vmem:[%s5 + $0x238] sm:$0xff]
    %v1438 = vld [vmem:[%s5 + $0x240] sm:$0xff]
    %v1439 = vld [vmem:[%s5 + $0x248] sm:$0xff]
    %v1440 = vld [vmem:[%s5 + $0x250] sm:$0xff]
    %v1441 = vld [vmem:[%s5 + $0x258] sm:$0xff]
    %v1442 = vld [vmem:[%s5 + $0x260] sm:$0xff]
    %v1443 = vld [vmem:[%s5 + $0x268] sm:$0xff]
    %v1444 = vld [vmem:[%s5 + $0x270] sm:$0xff]
    %v1445 = vld [vmem:[%s5 + $0x278] sm:$0xff]
    %v1446 = vld [vmem:[%s5 + $0x280] sm:$0xff]
    %v1447 = vld [vmem:[%s5 + $0x288] sm:$0xff]
    %v1448 = vld [vmem:[%s5 + $0x290] sm:$0xff]
    %v1449 = vld [vmem:[%s5 + $0x298] sm:$0xff]
    %v1450 = vld [vmem:[%s5 + $0x2a0] sm:$0xff]
    %v1451 = vld [vmem:[%s5 + $0x2a8] sm:$0xff]
    %v1452 = vld [vmem:[%s5 + $0x2b0] sm:$0xff]
    %v1453 = vld [vmem:[%s5 + $0x2b8] sm:$0xff]
    %v1454 = vld [vmem:[%s5 + $0x2c0] sm:$0xff]
    %v1455 = vld [vmem:[%s5 + $0x2c8] sm:$0xff]
    %v1456 = vld [vmem:[%s5 + $0x2d0] sm:$0xff]
    %v1457 = vld [vmem:[%s5 + $0x2d8] sm:$0xff]
    %v1458 = vld [vmem:[%s5 + $0x2e0] sm:$0xff]
    %v1459 = vld [vmem:[%s5 + $0x2e8] sm:$0xff]
    %v1460 = vld [vmem:[%s5 + $0x2f0] sm:$0xff]
    %v1461 = vld [vmem:[%s5 + $0x2f8] sm:$0xff]
    %v1462 = vld [vmem:[#allocation11] sm:$0x1]
    %v1464 = vlaneseq
    %v1465 = vshrl.u32 %v1464, 7
    %v1466 = vsub.s32 0, %v1465
    %v1467 = vrot.slane %v1462, %v1466
    %1469 = vmatprep.subr.mxu0 0.0
    %1470 = vmatpush1.msra.mxu0 %v1366
    %1471 = vmatprep.subr.mxu0 0.0
    %1472 = vmatpush1.msra.mxu0 %v1367
    %1473 = vmatprep.subr.mxu0 0.0
    %1474 = vmatpush1.msra.mxu0 %v1368
    %1475 = vmatprep.subr.mxu0 0.0
    %1476 = vmatpush1.msra.mxu0 %v1369
    %1477 = vmatprep.subr.mxu0 0.0
    %1478 = vmatpush1.msra.mxu0 %v1370
    %1479 = vmatprep.subr.mxu0 0.0
    %1480 = vmatpush1.msra.mxu0 %v1371
    %1481 = vmatprep.subr.mxu0 0.0
    %1482 = vmatpush1.msra.mxu0 %v1372
    %1483 = vmatprep.subr.mxu0 0.0
    %1484 = vmatpush1.msra.mxu0 %v1373
    %1485 = vmatprep.subr.mxu0 0.0
    %1486 = vmatpush1.msra.mxu0 %v1374
    %1487 = vmatprep.subr.mxu0 0.0
    %1488 = vmatpush1.msra.mxu0 %v1375
    %1489 = vmatprep.subr.mxu0 0.0
    %1490 = vmatpush1.msra.mxu0 %v1376
    %1491 = vmatprep.subr.mxu0 0.0
    %1492 = vmatpush1.msra.mxu0 %v1377
    %1493 = vmatprep.subr.mxu0 0.0
    %1494 = vmatpush1.msra.mxu0 %v1378
    %1495 = vmatprep.subr.mxu0 0.0
    %1496 = vmatpush1.msra.mxu0 %v1379
    %1497 = vmatprep.subr.mxu0 0.0
    %1498 = vmatpush1.msra.mxu0 %v1380
    %1499 = vmatprep.subr.mxu0 0.0
    %1500 = vmatpush1.msra.mxu0 %v1381
    %1501 = vmatprep.subr.mxu0 0.0
    %1502 = vmatpush1.msra.mxu0 %v1382
    %1503 = vmatprep.subr.mxu0 0.0
    %1504 = vmatpush1.msra.mxu0 %v1383
    %1505 = vmatprep.subr.mxu0 0.0
    %1506 = vmatpush1.msra.mxu0 %v1384
    %1507 = vmatprep.subr.mxu0 0.0
    %1508 = vmatpush1.msra.mxu0 %v1385
    %1509 = vmatprep.subr.mxu0 0.0
    %1510 = vmatpush1.msra.mxu0 %v1386
    %1511 = vmatprep.subr.mxu0 0.0
    %1512 = vmatpush1.msra.mxu0 %v1387
    %1513 = vmatprep.subr.mxu0 0.0
    %1514 = vmatpush1.msra.mxu0 %v1388
    %1515 = vmatprep.subr.mxu0 0.0
    %1516 = vmatpush1.msra.mxu0 %v1389
    %1517 = vmatprep.subr.mxu0 0.0
    %1518 = vmatpush1.msra.mxu0 %v1390
    %1519 = vmatprep.subr.mxu0 0.0
    %1520 = vmatpush1.msra.mxu0 %v1391
    %1521 = vmatprep.subr.mxu0 0.0
    %1522 = vmatpush1.msra.mxu0 %v1392
    %1523 = vmatprep.subr.mxu0 0.0
    %1524 = vmatpush1.msra.mxu0 %v1393
    %1525 = vmatprep.subr.mxu0 0.0
    %1526 = vmatpush1.msra.mxu0 %v1394
    %1527 = vmatprep.subr.mxu0 0.0
    %1528 = vmatpush1.msra.mxu0 %v1395
    %1529 = vmatprep.subr.mxu0 0.0
    %1530 = vmatpush1.msra.mxu0 %v1396
    %1531 = vmatprep.subr.mxu0 0.0
    %1532 = vmatpush1.msra.mxu0 %v1397
    %1533 = vmatprep.mubr.f32.mxu0 %v1361
    %1534 = vmatmul.mubr.f32.gmra.mrb[0].mxu0 %v1360
    %v1535 = vpop.f32.mrb[0].mxu0
    %v1536 = vadd.f32 %v1467, %v1535
    %v1537 = vpop.f32.mrb[0].mxu0
    %1538 = vdwg.mxu0
    %1539 = vmatprep.subr.mxu0 0.0
    %1540 = vmatpush1.msra.mxu0 %v1398
    %1541 = vmatprep.subr.mxu0 0.0
    %1542 = vmatpush1.msra.mxu0 %v1399
    %1543 = vmatprep.subr.mxu0 0.0
    %1544 = vmatpush1.msra.mxu0 %v1400
    %1545 = vmatprep.subr.mxu0 0.0
    %1546 = vmatpush1.msra.mxu0 %v1401
    %1547 = vmatprep.subr.mxu0 0.0
    %1548 = vmatpush1.msra.mxu0 %v1402
    %1549 = vmatprep.subr.mxu0 0.0
    %1550 = vmatpush1.msra.mxu0 %v1403
    %1551 = vmatprep.subr.mxu0 0.0
    %1552 = vmatpush1.msra.mxu0 %v1404
    %1553 = vmatprep.subr.mxu0 0.0
    %1554 = vmatpush1.msra.mxu0 %v1405
    %1555 = vmatprep.subr.mxu0 0.0
    %1556 = vmatpush1.msra.mxu0 %v1406
    %1557 = vmatprep.subr.mxu0 0.0
    %1558 = vmatpush1.msra.mxu0 %v1407
    %1559 = vmatprep.subr.mxu0 0.0
    %1560 = vmatpush1.msra.mxu0 %v1408
    %1561 = vmatprep.subr.mxu0 0.0
    %1562 = vmatpush1.msra.mxu0 %v1409
    %1563 = vmatprep.subr.mxu0 0.0
    %1564 = vmatpush1.msra.mxu0 %v1410
    %1565 = vmatprep.subr.mxu0 0.0
    %1566 = vmatpush1.msra.mxu0 %v1411
    %1567 = vmatprep.subr.mxu0 0.0
    %1568 = vmatpush1.msra.mxu0 %v1412
    %1569 = vmatprep.subr.mxu0 0.0
    %1570 = vmatpush1.msra.mxu0 %v1413
    %1571 = vmatprep.subr.mxu0 0.0
    %1572 = vmatpush1.msra.mxu0 %v1414
    %1573 = vmatprep.subr.mxu0 0.0
    %1574 = vmatpush1.msra.mxu0 %v1415
    %1575 = vmatprep.subr.mxu0 0.0
    %1576 = vmatpush1.msra.mxu0 %v1416
    %1577 = vmatprep.subr.mxu0 0.0
    %1578 = vmatpush1.msra.mxu0 %v1417
    %1579 = vmatprep.subr.mxu0 0.0
    %1580 = vmatpush1.msra.mxu0 %v1418
    %1581 = vmatprep.subr.mxu0 0.0
    %1582 = vmatpush1.msra.mxu0 %v1419
    %1583 = vmatprep.subr.mxu0 0.0
    %1584 = vmatpush1.msra.mxu0 %v1420
    %1585 = vmatprep.subr.mxu0 0.0
    %1586 = vmatpush1.msra.mxu0 %v1421
    %1587 = vmatprep.subr.mxu0 0.0
    %1588 = vmatpush1.msra.mxu0 %v1422
    %1589 = vmatprep.subr.mxu0 0.0
    %1590 = vmatpush1.msra.mxu0 %v1423
    %1591 = vmatprep.subr.mxu0 0.0
    %1592 = vmatpush1.msra.mxu0 %v1424
    %1593 = vmatprep.subr.mxu0 0.0
    %1594 = vmatpush1.msra.mxu0 %v1425
    %1595 = vmatprep.subr.mxu0 0.0
    %1596 = vmatpush1.msra.mxu0 %v1426
    %1597 = vmatprep.subr.mxu0 0.0
    %1598 = vmatpush1.msra.mxu0 %v1427
    %1599 = vmatprep.subr.mxu0 0.0
    %1600 = vmatpush1.msra.mxu0 %v1428
    %1601 = vmatprep.subr.mxu0 0.0
    %1602 = vmatpush1.msra.mxu0 %v1429
    %1603 = vmatprep.mubr.f32.mxu0 %v1363
    %1604 = vmatmul.mubr.f32.gmra.mrb[0].mxu0 %v1362
    %v1605 = vpop.f32.mrb[0].mxu0
    %v1606 = vadd.f32 %v1536, %v1605
    %v1607 = vpop.f32.mrb[0].mxu0
    %1608 = vdwg.mxu0
    %1609 = vmatprep.subr.mxu0 0.0
    %1610 = vmatpush1.msra.mxu0 %v1430
    %1611 = vmatprep.subr.mxu0 0.0
    %1612 = vmatpush1.msra.mxu0 %v1431
    %1613 = vmatprep.subr.mxu0 0.0
    %1614 = vmatpush1.msra.mxu0 %v1432
    %1615 = vmatprep.subr.mxu0 0.0
    %1616 = vmatpush1.msra.mxu0 %v1433
    %1617 = vmatprep.subr.mxu0 0.0
    %1618 = vmatpush1.msra.mxu0 %v1434
    %1619 = vmatprep.subr.mxu0 0.0
    %1620 = vmatpush1.msra.mxu0 %v1435
    %1621 = vmatprep.subr.mxu0 0.0
    %1622 = vmatpush1.msra.mxu0 %v1436
    %1623 = vmatprep.subr.mxu0 0.0
    %1624 = vmatpush1.msra.mxu0 %v1437
    %1625 = vmatprep.subr.mxu0 0.0
    %1626 = vmatpush1.msra.mxu0 %v1438
    %1627 = vmatprep.subr.mxu0 0.0
    %1628 = vmatpush1.msra.mxu0 %v1439
    %1629 = vmatprep.subr.mxu0 0.0
    %1630 = vmatpush1.msra.mxu0 %v1440
    %1631 = vmatprep.subr.mxu0 0.0
    %1632 = vmatpush1.msra.mxu0 %v1441
    %1633 = vmatprep.subr.mxu0 0.0
    %1634 = vmatpush1.msra.mxu0 %v1442
    %1635 = vmatprep.subr.mxu0 0.0
    %1636 = vmatpush1.msra.mxu0 %v1443
    %1637 = vmatprep.subr.mxu0 0.0
    %1638 = vmatpush1.msra.mxu0 %v1444
    %1639 = vmatprep.subr.mxu0 0.0
    %1640 = vmatpush1.msra.mxu0 %v1445
    %1641 = vmatprep.subr.mxu0 0.0
    %1642 = vmatpush1.msra.mxu0 %v1446
    %1643 = vmatprep.subr.mxu0 0.0
    %1644 = vmatpush1.msra.mxu0 %v1447
    %1645 = vmatprep.subr.mxu0 0.0
    %1646 = vmatpush1.msra.mxu0 %v1448
    %1647 = vmatprep.subr.mxu0 0.0
    %1648 = vmatpush1.msra.mxu0 %v1449
    %1649 = vmatprep.subr.mxu0 0.0
    %1650 = vmatpush1.msra.mxu0 %v1450
    %1651 = vmatprep.subr.mxu0 0.0
    %1652 = vmatpush1.msra.mxu0 %v1451
    %1653 = vmatprep.subr.mxu0 0.0
    %1654 = vmatpush1.msra.mxu0 %v1452
    %1655 = vmatprep.subr.mxu0 0.0
    %1656 = vmatpush1.msra.mxu0 %v1453
    %1657 = vmatprep.subr.mxu0 0.0
    %1658 = vmatpush1.msra.mxu0 %v1454
    %1659 = vmatprep.subr.mxu0 0.0
    %1660 = vmatpush1.msra.mxu0 %v1455
    %1661 = vmatprep.subr.mxu0 0.0
    %1662 = vmatpush1.msra.mxu0 %v1456
    %1663 = vmatprep.subr.mxu0 0.0
    %1664 = vmatpush1.msra.mxu0 %v1457
    %1665 = vmatprep.subr.mxu0 0.0
    %1666 = vmatpush1.msra.mxu0 %v1458
    %1667 = vmatprep.subr.mxu0 0.0
    %1668 = vmatpush1.msra.mxu0 %v1459
    %1669 = vmatprep.subr.mxu0 0.0
    %1670 = vmatpush1.msra.mxu0 %v1460
    %1671 = vmatprep.subr.mxu0 0.0
    %1672 = vmatpush1.msra.mxu0 %v1461
    %1673 = vmatprep.mubr.f32.mxu0 %v1365
    %1674 = vmatmul.mubr.f32.gmra.mrb[0].mxu0 %v1364
    %v1675 = vpop.f32.mrb[0].mxu0
    %v1676 = vadd.f32 %v1606, %v1675
    %v1677 = vpop.f32.mrb[0].mxu0
    %1678 = vdwg.mxu0
    %v1679 = vld [vmem:[#allocation5] sm:$0xff]
    %v1680 = vld [vmem:[#allocation7] sm:$0xff]
    %v1681 = vld [vmem:[#allocation7 + $0x8] sm:$0xff]
    %v1682 = vld [vmem:[#allocation7 + $0x10] sm:$0xff]
    %vm1683 = vcmask 195584
    %v1685 = vsel %vm1683, %v1679, 0
    %1687 = vmatprep.subr.mxu0 0.0
    %1688 = vmatpush1.msra.mxu0 %v1680
    %1689 = vmatprep.subr.mxu0 0.0
    %1690 = vmatpush1.msra.mxu0 %v1681
    %1691 = vmatprep.subr.mxu0 0.0
    %1692 = vmatpush1.msra.mxu0 %v1682
    %1693 = vmatprep.subr.mxu0 0.0
    %1694 = vmatpush1.msra.mxu0 0.0
    %1695 = vmatprep.subr.mxu0 0.0
    %1696 = vmatpush1.msra.mxu0 0.0
    %1697 = vmatprep.subr.mxu0 0.0
    %1698 = vmatpush1.msra.mxu0 0.0
    %1699 = vmatprep.subr.mxu0 0.0
    %1700 = vmatpush1.msra.mxu0 0.0
    %1701 = vmatprep.subr.mxu0 0.0
    %1702 = vmatpush1.msra.mxu0 0.0
    %1703 = vmatprep.subr.mxu0 0.0
    %1704 = vmatpush1.msra.mxu0 0.0
    %1705 = vmatprep.subr.mxu0 0.0
    %1706 = vmatpush1.msra.mxu0 0.0
    %1707 = vmatprep.subr.mxu0 0.0
    %1708 = vmatpush1.msra.mxu0 0.0
    %1709 = vmatprep.subr.mxu0 0.0
    %1710 = vmatpush1.msra.mxu0 0.0
    %1711 = vmatprep.subr.mxu0 0.0
    %1712 = vmatpush1.msra.mxu0 0.0
    %1713 = vmatprep.subr.mxu0 0.0
    %1714 = vmatpush1.msra.mxu0 0.0
    %1715 = vmatprep.subr.mxu0 0.0
    %1716 = vmatpush1.msra.mxu0 0.0
    %1717 = vmatprep.subr.mxu0 0.0
    %1718 = vmatpush1.msra.mxu0 0.0
    %1719 = vmatprep.subr.mxu0 0.0
    %1720 = vmatpush1.msra.mxu0 0.0
    %1721 = vmatprep.subr.mxu0 0.0
    %1722 = vmatpush1.msra.mxu0 0.0
    %1723 = vmatprep.subr.mxu0 0.0
    %1724 = vmatpush1.msra.mxu0 0.0
    %1725 = vmatprep.subr.mxu0 0.0
    %1726 = vmatpush1.msra.mxu0 0.0
    %1727 = vmatprep.subr.mxu0 0.0
    %1728 = vmatpush1.msra.mxu0 0.0
    %1729 = vmatprep.subr.mxu0 0.0
    %1730 = vmatpush1.msra.mxu0 0.0
    %1731 = vmatprep.subr.mxu0 0.0
    %1732 = vmatpush1.msra.mxu0 0.0
    %1733 = vmatprep.subr.mxu0 0.0
    %1734 = vmatpush1.msra.mxu0 0.0
    %1735 = vmatprep.subr.mxu0 0.0
    %1736 = vmatpush1.msra.mxu0 0.0
    %1737 = vmatprep.subr.mxu0 0.0
    %1738 = vmatpush1.msra.mxu0 0.0
    %1739 = vmatprep.subr.mxu0 0.0
    %1740 = vmatpush1.msra.mxu0 0.0
    %1741 = vmatprep.subr.mxu0 0.0
    %1742 = vmatpush1.msra.mxu0 0.0
    %1743 = vmatprep.subr.mxu0 0.0
    %1744 = vmatpush1.msra.mxu0 0.0
    %1745 = vmatprep.subr.mxu0 0.0
    %1746 = vmatpush1.msra.mxu0 0.0
    %1747 = vmatprep.subr.mxu0 0.0
    %1748 = vmatpush1.msra.mxu0 0.0
    %1749 = vmatprep.subr.mxu0 0.0
    %1750 = vmatpush1.msra.mxu0 0.0
    %1751 = vmatprep.mubr.f32.mxu0 0.0
    %1752 = vmatmul.mubr.f32.gmra.mrb[0].mxu0 %v1685
    %v1753 = vpop.f32.mrb[0].mxu0
    %v1754 = vadd.f32 0.0, %v1753
    %v1755 = vpop.f32.mrb[0].mxu0
    %1756 = vdwg.mxu0
    %vm1757 = vcmp.gt.f32.partialorder %v1754, 0.0
    %v1758 = vsel %vm1757, %v1676, 0.0
    %1759 = vst.msk [vmem:[#allocation13] sm:$0xff] %vm1683, %v1758
    // Predicated region
    $region54: #{tpu_custom_call.1} parent=1 // pred_check
      _
    $region55: #{tpu_custom_call.1} parent=1 // pred_check_branch
      %1761 = sbr.rel (0) target = $region57
    $region56: #{tpu_custom_call.1} parent=1 // pred_region
      %s1763 = ssub.s32 128, 128
      %1764 = vsyncadd [#allocation4], %s1763
      %s1766 = sshll.u32 [#allocation13], 4
      %s1767 = int_to_ptr.vmem [resolvable:$true] %s1766
      %1769 = dma.vmem_to_hbm [thread:$0]  %s1767, 128, %s7, [#allocation4]
    $region57: #{tpu_custom_call.1} parent=1 // pred_fallthru
      _
    // Predicated region
    $region58: #{tpu_custom_call.1} parent=1 // pred_check
      _
    $region59: #{tpu_custom_call.1} parent=1 // pred_check_branch
      %1771 = sbr.rel (0) target = $region61
    $region60: #{tpu_custom_call.1} parent=1 // pred_region
      %1772 = dma.done [#allocation4], 128
    $region61: #{tpu_custom_call.1} parent=1 // pred_fallthru
      _
    %1773 = vsyncpa [#allocation3], 1
    %1774 = vsyncpa [#allocation6], 1
    %1775 = vsyncpa [#allocation9], 1
    %1776 = vsyncpa [#allocation12], 1
    %1777 = vsyncpa [#allocation4], 1

</llo_original>
